<compile_context>
chip_gen: v5e
topology: v5e:2x2
jax: 0.10.0
libtpu: 0.0.40
codegen_flags: <defaults>
</compile_context>

<pallas_src>
import functools

import jax
import jax.numpy as jnp
from jax.experimental import pallas as pl
from jax.experimental.pallas import tpu as pltpu


# ---------------------------------------------------------------------------
# Kernels (all activations are (E, S) per batch: features on sublanes, tokens on lanes)
# ---------------------------------------------------------------------------

def _layernorm_t(xt, g_ref, b_ref):
    """LayerNorm over the feature (sublane) axis of a (E, S) tile; PyTorch eps/biased-var."""
    mu = jnp.mean(xt, axis=0, keepdims=True)                 # (1, S)
    xc = xt - mu                                             # computed once, reused
    var = jnp.mean(xc * xc, axis=0, keepdims=True)
    return xc * jax.lax.rsqrt(var + 1e-5) * g_ref[...] + b_ref[...]


def attn_block_kernel(x_ref, g1_ref, b1_ref, wqkv_ref, bqkv_ref, wo_ref, bo_ref,
                      o_ref, *, num_heads):
    """x1 = x + out_proj(MHA(LN1(x))) for one batch element, transposed layout (E, S)."""
    E, S = x_ref.shape[1], x_ref.shape[2]
    H = num_heads
    Dh = E // H
    mm = wqkv_ref.dtype                                      # matmul operand dtype (bf16/f32)

    xt = x_ref[0]                                            # (E, S) f32
    h1 = _layernorm_t(xt, g1_ref, b1_ref)                    # (E, S) f32

    # Fused QKV projection, native PyTorch (3E, E) weight layout, f32 accumulation.
    # 1/sqrt(Dh) is already folded into the Q rows of wqkv/bqkv at prep time.
    qkv = jnp.dot(wqkv_ref[...], h1.astype(mm),
                  preferred_element_type=jnp.float32) + bqkv_ref[...]    # (3E, S) f32

    # Head split is a free leading-dim reshape (Dh rows per head stay on sublanes).
    q = qkv[0 * E:1 * E].reshape(H, Dh, S)
    k = qkv[1 * E:2 * E].reshape(H, Dh, S)
    v = qkv[2 * E:3 * E].reshape(H, Dh, S)

    # Heads-batched scaled-dot-product attention (one batched MXU op per einsum).
    s = jnp.einsum('hdq,hdk->hqk', q.astype(mm), k.astype(mm),
                   preferred_element_type=jnp.float32)                    # (H, S, S) f32
    s = s - jnp.max(s, axis=-1, keepdims=True)
    p = jnp.exp(s)
    p = p * pl.reciprocal(jnp.sum(p, axis=-1, keepdims=True))             # exact reciprocal
    o = jnp.einsum('hdk,hqk->hdq', v.astype(mm), p.astype(mm),
                   preferred_element_type=jnp.float32)                    # (H, Dh, S) f32
    attn = o.reshape(E, S)                                                # free leading merge

    # Output projection (native (E, E) layout) + residual; single lane-dense store.
    o_ref[0] = (jnp.dot(wo_ref[...], attn.astype(mm),
                        preferred_element_type=jnp.float32)
                + bo_ref[...] + xt)


def mlp_stats_kernel(x_ref, g2_ref, b2_ref, w1_ref, c1_ref, stats_ref):
    """Pass 1 of the MLP branch: accumulate global sum / sum-of-squares of m1 = W1@LN2(x)+b1."""
    mm = w1_ref.dtype

    @pl.when(pl.program_id(0) == 0)
    def _():
        stats_ref[0] = jnp.float32(0.0)
        stats_ref[1] = jnp.float32(0.0)

    xt = x_ref[0]                                            # (E, S)
    h2 = _layernorm_t(xt, g2_ref, b2_ref)
    m1 = jnp.dot(w1_ref[...], h2.astype(mm),
                 preferred_element_type=jnp.float32) + c1_ref[...]        # (M, S) f32
    stats_ref[0] += jnp.sum(m1)
    stats_ref[1] += jnp.sum(m1 * m1)


def mlp_apply_kernel(stats_ref, x_ref, g2_ref, b2_ref, w1_ref, c1_ref,
                     w2_ref, c2_ref, aeg_ref, o_ref, *, n_total):
    """Pass 2: x2 = x + W2 @ OptAEGV3(W1 @ LN2(x) + b1) + b2 (dropouts = eval identity)."""
    mm = w1_ref.dtype

    xt = x_ref[0]                                            # (E, S)
    h2 = _layernorm_t(xt, g2_ref, b2_ref)
    m1 = jnp.dot(w1_ref[...], h2.astype(mm),
                 preferred_element_type=jnp.float32) + c1_ref[...]        # (M, S) f32

    # Global (whole-tensor) mean / unbiased std from the accumulated stats (torch .mean()/.std()).
    total = stats_ref[0]
    totsq = stats_ref[1]
    gmean = total / n_total
    gvar = (totsq - total * total / n_total) / (n_total - 1)
    gvar = jnp.maximum(gvar, 0.0)        # guard against one-pass cancellation going negative
    d = (m1 - gmean) * jax.lax.rsqrt(gvar)

    vx, vy, wx, wy, af, mf = (aeg_ref[0], aeg_ref[1], aeg_ref[2],
                              aeg_ref[3], aeg_ref[4], aeg_ref[5])
    # data.view(b, -1, 1): trailing dim is size 1, so the sum over dim=-1 is elementwise.
    v = d * (1.0 + vy) + vx
    w = d * (1.0 + wy) + wx
    dx = af * (v * jax.nn.sigmoid(w))
    dy = mf * jnp.tanh(d)
    m2 = d * (1.0 + dy) + dx                                              # (M, S) f32

    o_ref[0] = (jnp.dot(w2_ref[...], m2.astype(mm),
                        preferred_element_type=jnp.float32)
                + c2_ref[...] + xt)


# ---------------------------------------------------------------------------
# ViTBlock forward (3 pallas_calls, gridded over batch)
# ---------------------------------------------------------------------------

@functools.partial(jax.jit, static_argnames=("num_heads",))
def vit_block(x, prep, *, num_heads):
    S, B, E = x.shape
    assert E % num_heads == 0
    M = prep["mlp1_w"].shape[0]

    # (S, B, E) -> (B, E, S): tokens on lanes, features on sublanes (see TODO at top of file).
    xt = jnp.transpose(x, (1, 2, 0))

    def act_spec():
        return pl.BlockSpec((1, E, S), lambda b: (b, 0, 0))

    def resident(shape):                       # weights / params: DMA'd once, VMEM-resident
        return pl.BlockSpec(shape, lambda b: (0,) * len(shape))

    smem = pl.BlockSpec(memory_space=pltpu.MemorySpace.SMEM)

    # ---- K1: LN1 + QKV proj + heads-batched attention + out proj + residual ----
    x1t = pl.pallas_call(
        functools.partial(attn_block_kernel, num_heads=num_heads),
        out_shape=jax.ShapeDtypeStruct((B, E, S), jnp.float32),
        grid=(B,),
        in_specs=[act_spec(),
                  resident((E, 1)), resident((E, 1)),
                  resident((3 * E, E)), resident((3 * E, 1)),
                  resident((E, E)), resident((E, 1))],
        out_specs=act_spec(),
        input_output_aliases={0: 0},           # residual output reuses x's HBM buffer
        compiler_params=pltpu.CompilerParams(dimension_semantics=("parallel",)),
    )(xt, prep["ln1_g"], prep["ln1_b"], prep["in_proj_w"], prep["in_proj_b"],
      prep["out_proj_w"], prep["out_proj_b"])

    # ---- K2a: global sum / sum-of-squares of m1 (two-pass OptAEG reduction, pass 1) ----
    stats = pl.pallas_call(
        mlp_stats_kernel,
        out_shape=jax.ShapeDtypeStruct((2,), jnp.float32),
        grid=(B,),
        in_specs=[act_spec(),
                  resident((E, 1)), resident((E, 1)),
                  resident((M, E)), resident((M, 1))],
        out_specs=smem,
        compiler_params=pltpu.CompilerParams(dimension_semantics=("arbitrary",)),
    )(x1t, prep["ln2_g"], prep["ln2_b"], prep["mlp1_w"], prep["mlp1_b"])

    # ---- K2b: LN2 + MLP1 (recomputed, cheaper than round-tripping m1) + OptAEG + MLP2 + residual ----
    x2t = pl.pallas_call(
        functools.partial(mlp_apply_kernel, n_total=S * B * M),
        out_shape=jax.ShapeDtypeStruct((B, E, S), jnp.float32),
        grid=(B,),
        in_specs=[smem, act_spec(),
                  resident((E, 1)), resident((E, 1)),
                  resident((M, E)), resident((M, 1)),
                  resident((E, M)), resident((E, 1)),
                  smem],
        out_specs=act_spec(),
        input_output_aliases={1: 0},           # residual output reuses x1's HBM buffer
        compiler_params=pltpu.CompilerParams(dimension_semantics=("parallel",)),
    )(stats, x1t, prep["ln2_g"], prep["ln2_b"], prep["mlp1_w"], prep["mlp1_b"],
      prep["mlp2_w"], prep["mlp2_b"], prep["aeg"])

    return jnp.transpose(x2t, (2, 0, 1))       # back to (S, B, E)


# ---------------------------------------------------------------------------
# Parameters
# ---------------------------------------------------------------------------

def init_params(key, E, H, M):
    """Parameters in native PyTorch layouts ((out, in) weights, 1-D biases)."""
    ks = jax.random.split(key, 8)
    return dict(
        ln1_g=jnp.ones((E,), jnp.float32),
        ln1_b=jnp.zeros((E,), jnp.float32),
        ln2_g=jnp.ones((E,), jnp.float32),
        ln2_b=jnp.zeros((E,), jnp.float32),
        # nn.MultiheadAttention: in_proj_weight (3E, E), in_proj_bias (3E,)
        in_proj_w=jax.random.normal(ks[0], (3 * E, E), jnp.float32) * 0.05,
        in_proj_b=jax.random.normal(ks[1], (3 * E,), jnp.float32) * 0.01,
        out_proj_w=jax.random.normal(ks[2], (E, E), jnp.float32) * 0.05,
        out_proj_b=jax.random.normal(ks[3], (E,), jnp.float32) * 0.01,
        # MLP Linear layers (PyTorch weight layout: (out, in))
        mlp1_w=jax.random.normal(ks[4], (M, E), jnp.float32) * 0.05,
        mlp1_b=jax.random.normal(ks[5], (M,), jnp.float32) * 0.01,
        mlp2_w=jax.random.normal(ks[6], (E, M), jnp.float32) * 0.05,
        mlp2_b=jax.random.normal(ks[7], (E,), jnp.float32) * 0.01,
        # OptAEGV3 params [vx, vy, wx, wy, afactor, mfactor]; module inits them to
        # (0,1,0,1,0,1) -- small deterministic perturbations so no branch is dead.
        aeg=jnp.array([0.05, 0.95, -0.03, 1.02, 0.07, 0.90], jnp.float32),
    )


def prepare_params(p, num_heads, matmul_dtype=jnp.bfloat16):
    """One-time prep (outside the jitted forward):
       * fold 1/sqrt(Dh) into the Q rows of in_proj weight/bias,
       * cast matmul weights to matmul_dtype (bf16 default: native MXU rate on v6e/v7x,
         half the HBM->VMEM weight bytes; pass jnp.float32 for closer-to-reference numerics),
       * reshape biases / LN params to column vectors (D, 1) for the transposed layout.
       No per-call transposes: all weights stay in native PyTorch (out, in) layout."""
    E = p["ln1_g"].shape[0]
    Dh = E // num_heads
    scale = 1.0 / (Dh ** 0.5)
    w_in = jnp.concatenate([p["in_proj_w"][:E] * scale, p["in_proj_w"][E:]], axis=0)
    b_in = jnp.concatenate([p["in_proj_b"][:E] * scale, p["in_proj_b"][E:]])
    col = lambda v: v.reshape(-1, 1).astype(jnp.float32)
    return dict(
        ln1_g=col(p["ln1_g"]), ln1_b=col(p["ln1_b"]),
        ln2_g=col(p["ln2_g"]), ln2_b=col(p["ln2_b"]),
        in_proj_w=w_in.astype(matmul_dtype),          # (3E, E)
        in_proj_b=col(b_in),                          # (3E, 1) f32
        out_proj_w=p["out_proj_w"].astype(matmul_dtype),   # (E, E)
        out_proj_b=col(p["out_proj_b"]),
        mlp1_w=p["mlp1_w"].astype(matmul_dtype),      # (M, E)
        mlp1_b=col(p["mlp1_b"]),
        mlp2_w=p["mlp2_w"].astype(matmul_dtype),      # (E, M)
        mlp2_b=col(p["mlp2_b"]),
        aeg=p["aeg"].astype(jnp.float32),             # (6,) SMEM scalars
    )


if __name__ == "__main__":
    S, B, E, H, M = 8, 2, 32, 4, 64  # seq, batch, embed_dim, num_heads, mlp_dim
    key = jax.random.PRNGKey(0)
    kx, kp = jax.random.split(key)
    x = jax.random.normal(kx, (S, B, E), dtype=jnp.float32)
    params = init_params(kp, E, H, M)
    prep = prepare_params(params, num_heads=H)   # one-time weight prep (not per forward)

    out = vit_block(x, prep, num_heads=H)
    out = jax.block_until_ready(out)

    assert out.shape == (S, B, E)
    assert bool(jnp.all(jnp.isfinite(out)))
    print("KERNEL_OK")
</pallas_src>

<mosaic_0001>
module attributes {stable_mosaic.version = 11 : i64} {
  func.func @mlp_stats_kernel(%arg0: i32, %arg1: memref<1x32x8xf32, #tpu.memory_space<vmem>>, %arg2: memref<32x1xf32, #tpu.memory_space<vmem>>, %arg3: memref<32x1xf32, #tpu.memory_space<vmem>>, %arg4: memref<64x32xbf16, #tpu.memory_space<vmem>>, %arg5: memref<64x1xf32, #tpu.memory_space<vmem>>, %arg6: memref<2xf32, #tpu.memory_space<smem>>) attributes {dimension_semantics = [#tpu.dimension_semantics<arbitrary>], iteration_bounds = array<i64: 2>, scalar_prefetch = 0 : i64, scratch_operands = 0 : i64, tpu.core_type = #tpu.core_type<tc>, window_params = [{transform_indices = @transform_0, window_bounds = array<i64: 1, 32, 8>}, {pipeline_mode = #tpu.pipeline_mode<synchronous>, transform_indices = @transform_1, window_bounds = array<i64: 32, 1>}, {pipeline_mode = #tpu.pipeline_mode<synchronous>, transform_indices = @transform_2, window_bounds = array<i64: 32, 1>}, {pipeline_mode = #tpu.pipeline_mode<synchronous>, transform_indices = @transform_3, window_bounds = array<i64: 64, 32>}, {pipeline_mode = #tpu.pipeline_mode<synchronous>, transform_indices = @transform_4, window_bounds = array<i64: 64, 1>}, {transform_indices = @transform_5, window_bounds = array<i64: 2>}]} {
    %c0_i32 = arith.constant 0 : i32
    %0 = arith.cmpi eq, %arg0, %c0_i32 : i32
    %1 = arith.extui %0 : i1 to i32
    %c0_i32_0 = arith.constant 0 : i32
    %2 = arith.cmpi ne, %1, %c0_i32_0 : i32
    scf.if %2 {
      %cst_21 = arith.constant 0.000000e+00 : f32
      %c0_22 = arith.constant 0 : index
      %48 = memref.load %arg6[%c0_22] : memref<2xf32, #tpu.memory_space<smem>>
      memref.store %cst_21, %arg6[%c0_22] : memref<2xf32, #tpu.memory_space<smem>>
      %cst_23 = arith.constant 0.000000e+00 : f32
      %c1_24 = arith.constant 1 : index
      %49 = memref.load %arg6[%c1_24] : memref<2xf32, #tpu.memory_space<smem>>
      memref.store %cst_23, %arg6[%c1_24] : memref<2xf32, #tpu.memory_space<smem>>
    } else {
    }
    %c0 = arith.constant 0 : index
    %c0_1 = arith.constant 0 : index
    %c0_2 = arith.constant 0 : index
    %3 = vector.load %arg1[%c0, %c0_1, %c0_2] : memref<1x32x8xf32, #tpu.memory_space<vmem>>, vector<1x32x8xf32>
    %4 = vector.shape_cast %3 : vector<1x32x8xf32> to vector<32x8xf32>
    %cst = arith.constant dense<0.000000e+00> : vector<8xf32>
    %5 = vector.multi_reduction <add>, %4, %cst [0] : vector<32x8xf32> to vector<8xf32>
    %6 = vector.shape_cast %5 : vector<8xf32> to vector<1x8xf32>
    %cst_3 = arith.constant 3.200000e+01 : f32
    %7 = vector.broadcast %cst_3 : f32 to vector<1x8xf32>
    %8 = arith.divf %6, %7 : vector<1x8xf32>
    %9 = vector.broadcast %8 : vector<1x8xf32> to vector<32x8xf32>
    %10 = arith.subf %4, %9 : vector<32x8xf32>
    %11 = arith.mulf %10, %10 : vector<32x8xf32>
    %cst_4 = arith.constant dense<0.000000e+00> : vector<8xf32>
    %12 = vector.multi_reduction <add>, %11, %cst_4 [0] : vector<32x8xf32> to vector<8xf32>
    %13 = vector.shape_cast %12 : vector<8xf32> to vector<1x8xf32>
    %cst_5 = arith.constant 3.200000e+01 : f32
    %14 = vector.broadcast %cst_5 : f32 to vector<1x8xf32>
    %15 = arith.divf %13, %14 : vector<1x8xf32>
    %cst_6 = arith.constant 9.99999974E-6 : f32
    %16 = vector.broadcast %cst_6 : f32 to vector<1x8xf32>
    %17 = arith.addf %15, %16 : vector<1x8xf32>
    %18 = math.rsqrt %17 : vector<1x8xf32>
    %19 = vector.broadcast %18 : vector<1x8xf32> to vector<32x8xf32>
    %20 = arith.mulf %10, %19 : vector<32x8xf32>
    %c0_7 = arith.constant 0 : index
    %c0_8 = arith.constant 0 : index
    %21 = vector.load %arg2[%c0_7, %c0_8] : memref<32x1xf32, #tpu.memory_space<vmem>>, vector<32x1xf32>
    %22 = vector.broadcast %21 : vector<32x1xf32> to vector<32x8xf32>
    %23 = arith.mulf %20, %22 : vector<32x8xf32>
    %c0_9 = arith.constant 0 : index
    %c0_10 = arith.constant 0 : index
    %24 = vector.load %arg3[%c0_9, %c0_10] : memref<32x1xf32, #tpu.memory_space<vmem>>, vector<32x1xf32>
    %25 = vector.broadcast %24 : vector<32x1xf32> to vector<32x8xf32>
    %26 = arith.addf %23, %25 : vector<32x8xf32>
    %c0_11 = arith.constant 0 : index
    %c0_12 = arith.constant 0 : index
    %27 = vector.load %arg4[%c0_11, %c0_12] : memref<64x32xbf16, #tpu.memory_space<vmem>>, vector<64x32xbf16>
    %28 = arith.truncf %26 : vector<32x8xf32> to vector<32x8xbf16>
    %cst_13 = arith.constant dense<0.000000e+00> : vector<64x8xf32>
    %29 = tpu.matmul %27, %28, %cst_13 {dimension_numbers = #tpu.dot_dimension_numbers<[1], [0], [0], [1], [0, 0, 1, 1], [], []>} : vector<64x32xbf16>, vector<32x8xbf16>, vector<64x8xf32> -> vector<64x8xf32>
    %c0_14 = arith.constant 0 : index
    %c0_15 = arith.constant 0 : index
    %30 = vector.load %arg5[%c0_14, %c0_15] : memref<64x1xf32, #tpu.memory_space<vmem>>, vector<64x1xf32>
    %31 = vector.broadcast %30 : vector<64x1xf32> to vector<64x8xf32>
    %32 = arith.addf %29, %31 : vector<64x8xf32>
    %c0_16 = arith.constant 0 : index
    %33 = memref.load %arg6[%c0_16] : memref<2xf32, #tpu.memory_space<smem>>
    %34 = vector.shape_cast %32 : vector<64x8xf32> to vector<1x64x8xf32>
    %cst_17 = arith.constant dense<0.000000e+00> : vector<1xf32>
    %35 = vector.multi_reduction <add>, %34, %cst_17 [1, 2] : vector<1x64x8xf32> to vector<1xf32>
    %36 = vector.shape_cast %35 : vector<1xf32> to vector<1x1x1xf32>
    %37 = vector.extract %36[0, 0, 0] : f32 from vector<1x1x1xf32>
    %38 = arith.addf %33, %37 : f32
    %c0_18 = arith.constant 0 : index
    %39 = memref.load %arg6[%c0_18] : memref<2xf32, #tpu.memory_space<smem>>
    memref.store %38, %arg6[%c0_18] : memref<2xf32, #tpu.memory_space<smem>>
    %c1 = arith.constant 1 : index
    %40 = memref.load %arg6[%c1] : memref<2xf32, #tpu.memory_space<smem>>
    %41 = arith.mulf %32, %32 : vector<64x8xf32>
    %42 = vector.shape_cast %41 : vector<64x8xf32> to vector<1x64x8xf32>
    %cst_19 = arith.constant dense<0.000000e+00> : vector<1xf32>
    %43 = vector.multi_reduction <add>, %42, %cst_19 [1, 2] : vector<1x64x8xf32> to vector<1xf32>
    %44 = vector.shape_cast %43 : vector<1xf32> to vector<1x1x1xf32>
    %45 = vector.extract %44[0, 0, 0] : f32 from vector<1x1x1xf32>
    %46 = arith.addf %40, %45 : f32
    %c1_20 = arith.constant 1 : index
    %47 = memref.load %arg6[%c1_20] : memref<2xf32, #tpu.memory_space<smem>>
    memref.store %46, %arg6[%c1_20] : memref<2xf32, #tpu.memory_space<smem>>
    return
  }
  func.func @transform_0(%arg0: i32) -> (i32, i32, i32) {
    %c0_i32 = arith.constant 0 : i32
    %c0_i32_0 = arith.constant 0 : i32
    %c0_i32_1 = arith.constant 0 : i32
    return %arg0, %c0_i32, %c0_i32_0 : i32, i32, i32
  }
  func.func @transform_1(%arg0: i32) -> (i32, i32) {
    %c0_i32 = arith.constant 0 : i32
    %c0_i32_0 = arith.constant 0 : i32
    %c0_i32_1 = arith.constant 0 : i32
    return %c0_i32, %c0_i32_0 : i32, i32
  }
  func.func @transform_2(%arg0: i32) -> (i32, i32) {
    %c0_i32 = arith.constant 0 : i32
    %c0_i32_0 = arith.constant 0 : i32
    %c0_i32_1 = arith.constant 0 : i32
    return %c0_i32, %c0_i32_0 : i32, i32
  }
  func.func @transform_3(%arg0: i32) -> (i32, i32) {
    %c0_i32 = arith.constant 0 : i32
    %c0_i32_0 = arith.constant 0 : i32
    %c0_i32_1 = arith.constant 0 : i32
    return %c0_i32, %c0_i32_0 : i32, i32
  }
  func.func @transform_4(%arg0: i32) -> (i32, i32) {
    %c0_i32 = arith.constant 0 : i32
    %c0_i32_0 = arith.constant 0 : i32
    %c0_i32_1 = arith.constant 0 : i32
    return %c0_i32, %c0_i32_0 : i32, i32
  }
  func.func @transform_5(%arg0: i32) -> i32 {
    %c0_i32 = arith.constant 0 : i32
    %c0_i32_0 = arith.constant 0 : i32
    return %c0_i32 : i32
  }
}

module attributes {stable_mosaic.version = 11 : i64} {
  func.func @attn_block_kernel(%arg0: i32, %arg1: memref<1x32x8xf32, #tpu.memory_space<vmem>>, %arg2: memref<32x1xf32, #tpu.memory_space<vmem>>, %arg3: memref<32x1xf32, #tpu.memory_space<vmem>>, %arg4: memref<96x32xbf16, #tpu.memory_space<vmem>>, %arg5: memref<96x1xf32, #tpu.memory_space<vmem>>, %arg6: memref<32x32xbf16, #tpu.memory_space<vmem>>, %arg7: memref<32x1xf32, #tpu.memory_space<vmem>>, %arg8: memref<1x32x8xf32, #tpu.memory_space<vmem>>) attributes {dimension_semantics = [#tpu.dimension_semantics<parallel>], iteration_bounds = array<i64: 2>, scalar_prefetch = 0 : i64, scratch_operands = 0 : i64, tpu.core_type = #tpu.core_type<tc>, window_params = [{transform_indices = @transform_0, window_bounds = array<i64: 1, 32, 8>}, {pipeline_mode = #tpu.pipeline_mode<synchronous>, transform_indices = @transform_1, window_bounds = array<i64: 32, 1>}, {pipeline_mode = #tpu.pipeline_mode<synchronous>, transform_indices = @transform_2, window_bounds = array<i64: 32, 1>}, {pipeline_mode = #tpu.pipeline_mode<synchronous>, transform_indices = @transform_3, window_bounds = array<i64: 96, 32>}, {pipeline_mode = #tpu.pipeline_mode<synchronous>, transform_indices = @transform_4, window_bounds = array<i64: 96, 1>}, {pipeline_mode = #tpu.pipeline_mode<synchronous>, transform_indices = @transform_5, window_bounds = array<i64: 32, 32>}, {pipeline_mode = #tpu.pipeline_mode<synchronous>, transform_indices = @transform_6, window_bounds = array<i64: 32, 1>}, {transform_indices = @transform_7, window_bounds = array<i64: 1, 32, 8>}]} {
    %c0 = arith.constant 0 : index
    %c0_0 = arith.constant 0 : index
    %c0_1 = arith.constant 0 : index
    %0 = vector.load %arg1[%c0, %c0_0, %c0_1] : memref<1x32x8xf32, #tpu.memory_space<vmem>>, vector<1x32x8xf32>
    %1 = vector.shape_cast %0 : vector<1x32x8xf32> to vector<32x8xf32>
    %cst = arith.constant dense<0.000000e+00> : vector<8xf32>
    %2 = vector.multi_reduction <add>, %1, %cst [0] : vector<32x8xf32> to vector<8xf32>
    %3 = vector.shape_cast %2 : vector<8xf32> to vector<1x8xf32>
    %cst_2 = arith.constant 3.200000e+01 : f32
    %4 = vector.broadcast %cst_2 : f32 to vector<1x8xf32>
    %5 = arith.divf %3, %4 : vector<1x8xf32>
    %6 = vector.broadcast %5 : vector<1x8xf32> to vector<32x8xf32>
    %7 = arith.subf %1, %6 : vector<32x8xf32>
    %8 = arith.mulf %7, %7 : vector<32x8xf32>
    %cst_3 = arith.constant dense<0.000000e+00> : vector<8xf32>
    %9 = vector.multi_reduction <add>, %8, %cst_3 [0] : vector<32x8xf32> to vector<8xf32>
    %10 = vector.shape_cast %9 : vector<8xf32> to vector<1x8xf32>
    %cst_4 = arith.constant 3.200000e+01 : f32
    %11 = vector.broadcast %cst_4 : f32 to vector<1x8xf32>
    %12 = arith.divf %10, %11 : vector<1x8xf32>
    %cst_5 = arith.constant 9.99999974E-6 : f32
    %13 = vector.broadcast %cst_5 : f32 to vector<1x8xf32>
    %14 = arith.addf %12, %13 : vector<1x8xf32>
    %15 = math.rsqrt %14 : vector<1x8xf32>
    %16 = vector.broadcast %15 : vector<1x8xf32> to vector<32x8xf32>
    %17 = arith.mulf %7, %16 : vector<32x8xf32>
    %c0_6 = arith.constant 0 : index
    %c0_7 = arith.constant 0 : index
    %18 = vector.load %arg2[%c0_6, %c0_7] : memref<32x1xf32, #tpu.memory_space<vmem>>, vector<32x1xf32>
    %19 = vector.broadcast %18 : vector<32x1xf32> to vector<32x8xf32>
    %20 = arith.mulf %17, %19 : vector<32x8xf32>
    %c0_8 = arith.constant 0 : index
    %c0_9 = arith.constant 0 : index
    %21 = vector.load %arg3[%c0_8, %c0_9] : memref<32x1xf32, #tpu.memory_space<vmem>>, vector<32x1xf32>
    %22 = vector.broadcast %21 : vector<32x1xf32> to vector<32x8xf32>
    %23 = arith.addf %20, %22 : vector<32x8xf32>
    %c0_10 = arith.constant 0 : index
    %c0_11 = arith.constant 0 : index
    %24 = vector.load %arg4[%c0_10, %c0_11] : memref<96x32xbf16, #tpu.memory_space<vmem>>, vector<96x32xbf16>
    %25 = arith.truncf %23 : vector<32x8xf32> to vector<32x8xbf16>
    %cst_12 = arith.constant dense<0.000000e+00> : vector<96x8xf32>
    %26 = tpu.matmul %24, %25, %cst_12 {dimension_numbers = #tpu.dot_dimension_numbers<[1], [0], [0], [1], [0, 0, 1, 1], [], []>} : vector<96x32xbf16>, vector<32x8xbf16>, vector<96x8xf32> -> vector<96x8xf32>
    %c0_13 = arith.constant 0 : index
    %c0_14 = arith.constant 0 : index
    %27 = vector.load %arg5[%c0_13, %c0_14] : memref<96x1xf32, #tpu.memory_space<vmem>>, vector<96x1xf32>
    %28 = vector.broadcast %27 : vector<96x1xf32> to vector<96x8xf32>
    %29 = arith.addf %26, %28 : vector<96x8xf32>
    %30 = vector.extract_strided_slice %29 {offsets = [0, 0], sizes = [32, 8], strides = [1, 1]} : vector<96x8xf32> to vector<32x8xf32>
    %31 = vector.shape_cast %30 : vector<32x8xf32> to vector<4x8x8xf32>
    %32 = vector.extract_strided_slice %29 {offsets = [32, 0], sizes = [32, 8], strides = [1, 1]} : vector<96x8xf32> to vector<32x8xf32>
    %33 = vector.shape_cast %32 : vector<32x8xf32> to vector<4x8x8xf32>
    %34 = vector.extract_strided_slice %29 {offsets = [64, 0], sizes = [32, 8], strides = [1, 1]} : vector<96x8xf32> to vector<32x8xf32>
    %35 = vector.shape_cast %34 : vector<32x8xf32> to vector<4x8x8xf32>
    %36 = arith.truncf %31 : vector<4x8x8xf32> to vector<4x8x8xbf16>
    %37 = arith.truncf %33 : vector<4x8x8xf32> to vector<4x8x8xbf16>
    "tpu.trace_start"() <{level = 10 : i32, message = "hdq,hdk->hqk"}> : () -> ()
    %cst_15 = arith.constant dense<0.000000e+00> : vector<4x8x8xf32>
    %38 = tpu.matmul %36, %37, %cst_15 {dimension_numbers = #tpu.dot_dimension_numbers<[1], [1], [2], [2], [0, 0, 0, 2, 1, 2], [0], [0]>} : vector<4x8x8xbf16>, vector<4x8x8xbf16>, vector<4x8x8xf32> -> vector<4x8x8xf32>
    "tpu.trace_stop"() : () -> ()
    %cst_16 = arith.constant dense<0xFF800000> : vector<4x8xf32>
    %39 = vector.multi_reduction <maximumf>, %38, %cst_16 [2] : vector<4x8x8xf32> to vector<4x8xf32>
    %40 = vector.shape_cast %39 : vector<4x8xf32> to vector<4x8x1xf32>
    %41 = vector.broadcast %40 : vector<4x8x1xf32> to vector<4x8x8xf32>
    %42 = arith.subf %38, %41 : vector<4x8x8xf32>
    %43 = math.exp %42 : vector<4x8x8xf32>
    %cst_17 = arith.constant dense<0.000000e+00> : vector<4x8xf32>
    %44 = vector.multi_reduction <add>, %43, %cst_17 [2] : vector<4x8x8xf32> to vector<4x8xf32>
    %45 = vector.shape_cast %44 : vector<4x8xf32> to vector<4x8x1xf32>
    %46 = tpu.reciprocal %45 : vector<4x8x1xf32> -> vector<4x8x1xf32>
    %47 = vector.broadcast %46 : vector<4x8x1xf32> to vector<4x8x8xf32>
    %48 = arith.mulf %43, %47 : vector<4x8x8xf32>
    %49 = arith.truncf %35 : vector<4x8x8xf32> to vector<4x8x8xbf16>
    %50 = arith.truncf %48 : vector<4x8x8xf32> to vector<4x8x8xbf16>
    "tpu.trace_start"() <{level = 10 : i32, message = "hdk,hqk->hdq"}> : () -> ()
    %cst_18 = arith.constant dense<0.000000e+00> : vector<4x8x8xf32>
    %51 = tpu.matmul %49, %50, %cst_18 {dimension_numbers = #tpu.dot_dimension_numbers<[2], [2], [1], [1], [0, 0, 0, 1, 1, 1], [0], [0]>} : vector<4x8x8xbf16>, vector<4x8x8xbf16>, vector<4x8x8xf32> -> vector<4x8x8xf32>
    "tpu.trace_stop"() : () -> ()
    %52 = vector.shape_cast %51 : vector<4x8x8xf32> to vector<32x8xf32>
    %c0_19 = arith.constant 0 : index
    %c0_20 = arith.constant 0 : index
    %53 = vector.load %arg6[%c0_19, %c0_20] : memref<32x32xbf16, #tpu.memory_space<vmem>>, vector<32x32xbf16>
    %54 = arith.truncf %52 : vector<32x8xf32> to vector<32x8xbf16>
    %cst_21 = arith.constant dense<0.000000e+00> : vector<32x8xf32>
    %55 = tpu.matmul %53, %54, %cst_21 {dimension_numbers = #tpu.dot_dimension_numbers<[1], [0], [0], [1], [0, 0, 1, 1], [], []>} : vector<32x32xbf16>, vector<32x8xbf16>, vector<32x8xf32> -> vector<32x8xf32>
    %c0_22 = arith.constant 0 : index
    %c0_23 = arith.constant 0 : index
    %56 = vector.load %arg7[%c0_22, %c0_23] : memref<32x1xf32, #tpu.memory_space<vmem>>, vector<32x1xf32>
    %57 = vector.broadcast %56 : vector<32x1xf32> to vector<32x8xf32>
    %58 = arith.addf %55, %57 : vector<32x8xf32>
    %59 = arith.addf %58, %1 : vector<32x8xf32>
    %c0_24 = arith.constant 0 : index
    %c0_25 = arith.constant 0 : index
    %c0_26 = arith.constant 0 : index
    %60 = vector.load %arg8[%c0_24, %c0_25, %c0_26] : memref<1x32x8xf32, #tpu.memory_space<vmem>>, vector<1x32x8xf32>
    %61 = vector.shape_cast %60 : vector<1x32x8xf32> to vector<32x8xf32>
    %62 = vector.shape_cast %59 : vector<32x8xf32> to vector<1x32x8xf32>
    tpu.vector_store %arg8[%c0_24, %c0_25, %c0_26], %62 {strides = array<i32>} : memref<1x32x8xf32, #tpu.memory_space<vmem>>, vector<1x32x8xf32>,
    return
  }
  func.func @transform_0(%arg0: i32) -> (i32, i32, i32) {
    %c0_i32 = arith.constant 0 : i32
    %c0_i32_0 = arith.constant 0 : i32
    %c0_i32_1 = arith.constant 0 : i32
    return %arg0, %c0_i32, %c0_i32_0 : i32, i32, i32
  }
  func.func @transform_1(%arg0: i32) -> (i32, i32) {
    %c0_i32 = arith.constant 0 : i32
    %c0_i32_0 = arith.constant 0 : i32
    %c0_i32_1 = arith.constant 0 : i32
    return %c0_i32, %c0_i32_0 : i32, i32
  }
  func.func @transform_2(%arg0: i32) -> (i32, i32) {
    %c0_i32 = arith.constant 0 : i32
    %c0_i32_0 = arith.constant 0 : i32
    %c0_i32_1 = arith.constant 0 : i32
    return %c0_i32, %c0_i32_0 : i32, i32
  }
  func.func @transform_3(%arg0: i32) -> (i32, i32) {
    %c0_i32 = arith.constant 0 : i32
    %c0_i32_0 = arith.constant 0 : i32
    %c0_i32_1 = arith.constant 0 : i32
    return %c0_i32, %c0_i32_0 : i32, i32
  }
  func.func @transform_4(%arg0: i32) -> (i32, i32) {
    %c0_i32 = arith.constant 0 : i32
    %c0_i32_0 = arith.constant 0 : i32
    %c0_i32_1 = arith.constant 0 : i32
    return %c0_i32, %c0_i32_0 : i32, i32
  }
  func.func @transform_5(%arg0: i32) -> (i32, i32) {
    %c0_i32 = arith.constant 0 : i32
    %c0_i32_0 = arith.constant 0 : i32
    %c0_i32_1 = arith.constant 0 : i32
    return %c0_i32, %c0_i32_0 : i32, i32
  }
  func.func @transform_6(%arg0: i32) -> (i32, i32) {
    %c0_i32 = arith.constant 0 : i32
    %c0_i32_0 = arith.constant 0 : i32
    %c0_i32_1 = arith.constant 0 : i32
    return %c0_i32, %c0_i32_0 : i32, i32
  }
  func.func @transform_7(%arg0: i32) -> (i32, i32, i32) {
    %c0_i32 = arith.constant 0 : i32
    %c0_i32_0 = arith.constant 0 : i32
    %c0_i32_1 = arith.constant 0 : i32
    return %arg0, %c0_i32, %c0_i32_0 : i32, i32, i32
  }
}

module attributes {stable_mosaic.version = 11 : i64} {
  func.func @mlp_apply_kernel(%arg0: i32, %arg1: memref<2xf32, #tpu.memory_space<smem>>, %arg2: memref<1x32x8xf32, #tpu.memory_space<vmem>>, %arg3: memref<32x1xf32, #tpu.memory_space<vmem>>, %arg4: memref<32x1xf32, #tpu.memory_space<vmem>>, %arg5: memref<64x32xbf16, #tpu.memory_space<vmem>>, %arg6: memref<64x1xf32, #tpu.memory_space<vmem>>, %arg7: memref<32x64xbf16, #tpu.memory_space<vmem>>, %arg8: memref<32x1xf32, #tpu.memory_space<vmem>>, %arg9: memref<6xf32, #tpu.memory_space<smem>>, %arg10: memref<1x32x8xf32, #tpu.memory_space<vmem>>) attributes {dimension_semantics = [#tpu.dimension_semantics<parallel>], iteration_bounds = array<i64: 2>, scalar_prefetch = 0 : i64, scratch_operands = 0 : i64, tpu.core_type = #tpu.core_type<tc>, window_params = [{transform_indices = @transform_0, window_bounds = array<i64: 2>}, {transform_indices = @transform_1, window_bounds = array<i64: 1, 32, 8>}, {pipeline_mode = #tpu.pipeline_mode<synchronous>, transform_indices = @transform_2, window_bounds = array<i64: 32, 1>}, {pipeline_mode = #tpu.pipeline_mode<synchronous>, transform_indices = @transform_3, window_bounds = array<i64: 32, 1>}, {pipeline_mode = #tpu.pipeline_mode<synchronous>, transform_indices = @transform_4, window_bounds = array<i64: 64, 32>}, {pipeline_mode = #tpu.pipeline_mode<synchronous>, transform_indices = @transform_5, window_bounds = array<i64: 64, 1>}, {pipeline_mode = #tpu.pipeline_mode<synchronous>, transform_indices = @transform_6, window_bounds = array<i64: 32, 64>}, {pipeline_mode = #tpu.pipeline_mode<synchronous>, transform_indices = @transform_7, window_bounds = array<i64: 32, 1>}, {transform_indices = @transform_8, window_bounds = array<i64: 6>}, {transform_indices = @transform_9, window_bounds = array<i64: 1, 32, 8>}]} {
    %c0 = arith.constant 0 : index
    %c0_0 = arith.constant 0 : index
    %c0_1 = arith.constant 0 : index
    %0 = vector.load %arg2[%c0, %c0_0, %c0_1] : memref<1x32x8xf32, #tpu.memory_space<vmem>>, vector<1x32x8xf32>
    %1 = vector.shape_cast %0 : vector<1x32x8xf32> to vector<32x8xf32>
    %cst = arith.constant dense<0.000000e+00> : vector<8xf32>
    %2 = vector.multi_reduction <add>, %1, %cst [0] : vector<32x8xf32> to vector<8xf32>
    %3 = vector.shape_cast %2 : vector<8xf32> to vector<1x8xf32>
    %cst_2 = arith.constant 3.200000e+01 : f32
    %4 = vector.broadcast %cst_2 : f32 to vector<1x8xf32>
    %5 = arith.divf %3, %4 : vector<1x8xf32>
    %6 = vector.broadcast %5 : vector<1x8xf32> to vector<32x8xf32>
    %7 = arith.subf %1, %6 : vector<32x8xf32>
    %8 = arith.mulf %7, %7 : vector<32x8xf32>
    %cst_3 = arith.constant dense<0.000000e+00> : vector<8xf32>
    %9 = vector.multi_reduction <add>, %8, %cst_3 [0] : vector<32x8xf32> to vector<8xf32>
    %10 = vector.shape_cast %9 : vector<8xf32> to vector<1x8xf32>
    %cst_4 = arith.constant 3.200000e+01 : f32
    %11 = vector.broadcast %cst_4 : f32 to vector<1x8xf32>
    %12 = arith.divf %10, %11 : vector<1x8xf32>
    %cst_5 = arith.constant 9.99999974E-6 : f32
    %13 = vector.broadcast %cst_5 : f32 to vector<1x8xf32>
    %14 = arith.addf %12, %13 : vector<1x8xf32>
    %15 = math.rsqrt %14 : vector<1x8xf32>
    %16 = vector.broadcast %15 : vector<1x8xf32> to vector<32x8xf32>
    %17 = arith.mulf %7, %16 : vector<32x8xf32>
    %c0_6 = arith.constant 0 : index
    %c0_7 = arith.constant 0 : index
    %18 = vector.load %arg3[%c0_6, %c0_7] : memref<32x1xf32, #tpu.memory_space<vmem>>, vector<32x1xf32>
    %19 = vector.broadcast %18 : vector<32x1xf32> to vector<32x8xf32>
    %20 = arith.mulf %17, %19 : vector<32x8xf32>
    %c0_8 = arith.constant 0 : index
    %c0_9 = arith.constant 0 : index
    %21 = vector.load %arg4[%c0_8, %c0_9] : memref<32x1xf32, #tpu.memory_space<vmem>>, vector<32x1xf32>
    %22 = vector.broadcast %21 : vector<32x1xf32> to vector<32x8xf32>
    %23 = arith.addf %20, %22 : vector<32x8xf32>
    %c0_10 = arith.constant 0 : index
    %c0_11 = arith.constant 0 : index
    %24 = vector.load %arg5[%c0_10, %c0_11] : memref<64x32xbf16, #tpu.memory_space<vmem>>, vector<64x32xbf16>
    %25 = arith.truncf %23 : vector<32x8xf32> to vector<32x8xbf16>
    %cst_12 = arith.constant dense<0.000000e+00> : vector<64x8xf32>
    %26 = tpu.matmul %24, %25, %cst_12 {dimension_numbers = #tpu.dot_dimension_numbers<[1], [0], [0], [1], [0, 0, 1, 1], [], []>} : vector<64x32xbf16>, vector<32x8xbf16>, vector<64x8xf32> -> vector<64x8xf32>
    %c0_13 = arith.constant 0 : index
    %c0_14 = arith.constant 0 : index
    %27 = vector.load %arg6[%c0_13, %c0_14] : memref<64x1xf32, #tpu.memory_space<vmem>>, vector<64x1xf32>
    %28 = vector.broadcast %27 : vector<64x1xf32> to vector<64x8xf32>
    %29 = arith.addf %26, %28 : vector<64x8xf32>
    %c0_15 = arith.constant 0 : index
    %30 = memref.load %arg1[%c0_15] : memref<2xf32, #tpu.memory_space<smem>>
    %c1 = arith.constant 1 : index
    %31 = memref.load %arg1[%c1] : memref<2xf32, #tpu.memory_space<smem>>
    %cst_16 = arith.constant 1.024000e+03 : f32
    %32 = arith.divf %30, %cst_16 : f32
    %33 = arith.mulf %30, %30 : f32
    %cst_17 = arith.constant 1.024000e+03 : f32
    %34 = arith.divf %33, %cst_17 : f32
    %35 = arith.subf %31, %34 : f32
    %cst_18 = arith.constant 1.023000e+03 : f32
    %36 = arith.divf %35, %cst_18 : f32
    %cst_19 = arith.constant 0.000000e+00 : f32
    %37 = arith.maximumf %36, %cst_19 : f32
    %38 = vector.broadcast %32 : f32 to vector<64x8xf32>
    %39 = arith.subf %29, %38 : vector<64x8xf32>
    %40 = math.rsqrt %37 : f32
    %41 = vector.broadcast %40 : f32 to vector<64x8xf32>
    %42 = arith.mulf %39, %41 : vector<64x8xf32>
    %c0_20 = arith.constant 0 : index
    %43 = memref.load %arg9[%c0_20] : memref<6xf32, #tpu.memory_space<smem>>
    %c1_21 = arith.constant 1 : index
    %44 = memref.load %arg9[%c1_21] : memref<6xf32, #tpu.memory_space<smem>>
    %c2 = arith.constant 2 : index
    %45 = memref.load %arg9[%c2] : memref<6xf32, #tpu.memory_space<smem>>
    %c3 = arith.constant 3 : index
    %46 = memref.load %arg9[%c3] : memref<6xf32, #tpu.memory_space<smem>>
    %c4 = arith.constant 4 : index
    %47 = memref.load %arg9[%c4] : memref<6xf32, #tpu.memory_space<smem>>
    %c5 = arith.constant 5 : index
    %48 = memref.load %arg9[%c5] : memref<6xf32, #tpu.memory_space<smem>>
    %cst_22 = arith.constant 1.000000e+00 : f32
    %49 = arith.addf %cst_22, %44 : f32
    %50 = vector.broadcast %49 : f32 to vector<64x8xf32>
    %51 = arith.mulf %42, %50 : vector<64x8xf32>
    %52 = vector.broadcast %43 : f32 to vector<64x8xf32>
    %53 = arith.addf %51, %52 : vector<64x8xf32>
    %cst_23 = arith.constant 1.000000e+00 : f32
    %54 = arith.addf %cst_23, %46 : f32
    %55 = vector.broadcast %54 : f32 to vector<64x8xf32>
    %56 = arith.mulf %42, %55 : vector<64x8xf32>
    %57 = vector.broadcast %45 : f32 to vector<64x8xf32>
    %58 = arith.addf %56, %57 : vector<64x8xf32>
    %59 = arith.negf %58 : vector<64x8xf32>
    %60 = math.exp %59 : vector<64x8xf32>
    %cst_24 = arith.constant 1.000000e+00 : f32
    %61 = vector.broadcast %cst_24 : f32 to vector<64x8xf32>
    %62 = arith.addf %61, %60 : vector<64x8xf32>
    %63 = arith.divf %61, %62 : vector<64x8xf32>
    %64 = arith.mulf %53, %63 : vector<64x8xf32>
    %65 = vector.broadcast %47 : f32 to vector<64x8xf32>
    %66 = arith.mulf %65, %64 : vector<64x8xf32>
    %67 = math.tanh %42 : vector<64x8xf32>
    %68 = vector.broadcast %48 : f32 to vector<64x8xf32>
    %69 = arith.mulf %68, %67 : vector<64x8xf32>
    %cst_25 = arith.constant 1.000000e+00 : f32
    %70 = vector.broadcast %cst_25 : f32 to vector<64x8xf32>
    %71 = arith.addf %70, %69 : vector<64x8xf32>
    %72 = arith.mulf %42, %71 : vector<64x8xf32>
    %73 = arith.addf %72, %66 : vector<64x8xf32>
    %c0_26 = arith.constant 0 : index
    %c0_27 = arith.constant 0 : index
    %74 = vector.load %arg7[%c0_26, %c0_27] : memref<32x64xbf16, #tpu.memory_space<vmem>>, vector<32x64xbf16>
    %75 = arith.truncf %73 : vector<64x8xf32> to vector<64x8xbf16>
    %cst_28 = arith.constant dense<0.000000e+00> : vector<32x8xf32>
    %76 = tpu.matmul %74, %75, %cst_28 {dimension_numbers = #tpu.dot_dimension_numbers<[1], [0], [0], [1], [0, 0, 1, 1], [], []>} : vector<32x64xbf16>, vector<64x8xbf16>, vector<32x8xf32> -> vector<32x8xf32>
    %c0_29 = arith.constant 0 : index
    %c0_30 = arith.constant 0 : index
    %77 = vector.load %arg8[%c0_29, %c0_30] : memref<32x1xf32, #tpu.memory_space<vmem>>, vector<32x1xf32>
    %78 = vector.broadcast %77 : vector<32x1xf32> to vector<32x8xf32>
    %79 = arith.addf %76, %78 : vector<32x8xf32>
    %80 = arith.addf %79, %1 : vector<32x8xf32>
    %c0_31 = arith.constant 0 : index
    %c0_32 = arith.constant 0 : index
    %c0_33 = arith.constant 0 : index
    %81 = vector.load %arg10[%c0_31, %c0_32, %c0_33] : memref<1x32x8xf32, #tpu.memory_space<vmem>>, vector<1x32x8xf32>
    %82 = vector.shape_cast %81 : vector<1x32x8xf32> to vector<32x8xf32>
    %83 = vector.shape_cast %80 : vector<32x8xf32> to vector<1x32x8xf32>
    tpu.vector_store %arg10[%c0_31, %c0_32, %c0_33], %83 {strides = array<i32>} : memref<1x32x8xf32, #tpu.memory_space<vmem>>, vector<1x32x8xf32>,
    return
  }
  func.func @transform_0(%arg0: i32) -> i32 {
    %c0_i32 = arith.constant 0 : i32
    %c0_i32_0 = arith.constant 0 : i32
    return %c0_i32 : i32
  }
  func.func @transform_1(%arg0: i32) -> (i32, i32, i32) {
    %c0_i32 = arith.constant 0 : i32
    %c0_i32_0 = arith.constant 0 : i32
    %c0_i32_1 = arith.constant 0 : i32
    return %arg0, %c0_i32, %c0_i32_0 : i32, i32, i32
  }
  func.func @transform_2(%arg0: i32) -> (i32, i32) {
    %c0_i32 = arith.constant 0 : i32
    %c0_i32_0 = arith.constant 0 : i32
    %c0_i32_1 = arith.constant 0 : i32
    return %c0_i32, %c0_i32_0 : i32, i32
  }
  func.func @transform_3(%arg0: i32) -> (i32, i32) {
    %c0_i32 = arith.constant 0 : i32
    %c0_i32_0 = arith.constant 0 : i32
    %c0_i32_1 = arith.constant 0 : i32
    return %c0_i32, %c0_i32_0 : i32, i32
  }
  func.func @transform_4(%arg0: i32) -> (i32, i32) {
    %c0_i32 = arith.constant 0 : i32
    %c0_i32_0 = arith.constant 0 : i32
    %c0_i32_1 = arith.constant 0 : i32
    return %c0_i32, %c0_i32_0 : i32, i32
  }
  func.func @transform_5(%arg0: i32) -> (i32, i32) {
    %c0_i32 = arith.constant 0 : i32
    %c0_i32_0 = arith.constant 0 : i32
    %c0_i32_1 = arith.constant 0 : i32
    return %c0_i32, %c0_i32_0 : i32, i32
  }
  func.func @transform_6(%arg0: i32) -> (i32, i32) {
    %c0_i32 = arith.constant 0 : i32
    %c0_i32_0 = arith.constant 0 : i32
    %c0_i32_1 = arith.constant 0 : i32
    return %c0_i32, %c0_i32_0 : i32, i32
  }
  func.func @transform_7(%arg0: i32) -> (i32, i32) {
    %c0_i32 = arith.constant 0 : i32
    %c0_i32_0 = arith.constant 0 : i32
    %c0_i32_1 = arith.constant 0 : i32
    return %c0_i32, %c0_i32_0 : i32, i32
  }
  func.func @transform_8(%arg0: i32) -> i32 {
    %c0_i32 = arith.constant 0 : i32
    %c0_i32_0 = arith.constant 0 : i32
    return %c0_i32 : i32
  }
  func.func @transform_9(%arg0: i32) -> (i32, i32, i32) {
    %c0_i32 = arith.constant 0 : i32
    %c0_i32_0 = arith.constant 0 : i32
    %c0_i32_1 = arith.constant 0 : i32
    return %arg0, %c0_i32, %c0_i32_0 : i32, i32, i32
  }
}

</mosaic_0001>

<llo_original>
// kernel: vit_block.3
$region0: #{vit_block.3}
  #allocation0 [shape = 'u32[]', space=smem, size = 0x4, offset = 0x4, fixed_abs, tag = 'smem constant byte address 0x4 - core index']
  #allocation1 [shape = 'u32[72,128]{1,0:T(1,128)}', space=vmem, size = 0x9000, scoped, tag = 'internal scratch']
  %s0 = inlined_call_operand.vmem [shape: f32[2,32,8], index: 0, kind: input, shape index: {}, may-alias: {0,7}]
  %s1 = inlined_call_operand.vmem [shape: f32[32,1], index: 1, kind: input, shape index: {}]
  %s2 = inlined_call_operand.vmem [shape: f32[32,1], index: 2, kind: input, shape index: {}]
  %s3 = inlined_call_operand.vmem [shape: bf16[96,32], index: 3, kind: input, shape index: {}]
  %s4 = inlined_call_operand.vmem [shape: f32[96,1], index: 4, kind: input, shape index: {}]
  %s5 = inlined_call_operand.vmem [shape: bf16[32,32], index: 5, kind: input, shape index: {}]
  %s6 = inlined_call_operand.vmem [shape: f32[32,1], index: 6, kind: input, shape index: {}]
  %s7 = inlined_call_operand.vmem [shape: f32[2,32,8], index: 7, kind: output, shape index: {}, may-alias: {0,7}]
  %s8 = sld [smem:[#allocation0]]
  $region61: #{vit_block.3} parent=0
    _
  %s10 = ssub.s32 1, %s8
  %s11 = scalar_select 0, %s10, %s8
  loop: start=0, step=1, limit=4
  $region2: #{vit_block.3} parent=0 // loop_pre_header
    _
  $region3: #{vit_block.3} parent=0 // loop_header
    %s13 = sphi 0, %s17
    %p14 = scmp.ge.s32.totalorder %s13, 4
    %s23 = sphi 0, %s25
    %s26 = sphi 0, %s23
    %s27 = sphi 0, %s26
    %s43 = sphi 0, %s27
    %s47 = sphi 0, %s47
    %s49 = sphi 0, %s47
    %s50 = sphi 0, %s49
    %s64 = sphi 0, %s50
    %s68 = sphi 0, %s68
    %s70 = sphi 0, %s68
    %s71 = sphi 0, %s70
    %s85 = sphi 0, %s71
    %s89 = sphi 0, %s89
    %s91 = sphi 0, %s89
    %s92 = sphi 0, %s91
    %s106 = sphi 0, %s92
    %s110 = sphi 0, %s110
    %s112 = sphi 0, %s110
    %s113 = sphi 0, %s112
    %s127 = sphi 0, %s113
    %s131 = sphi 0, %s131
    %s133 = sphi 0, %s131
    %s134 = sphi 0, %s133
    %s148 = sphi 0, %s134
    %s152 = sphi 0, %s152
    %s154 = sphi 0, %s152
    %s155 = sphi 0, %s154
    %s169 = sphi 0, %s155
    %s175 = sphi 0, %s177
    %s178 = sphi 0, %s175
    %s179 = sphi 0, %s178
    %s195 = sphi 0, %s179
  $region4: #{vit_block.3} parent=0 // loop_header_branch
    %16 = sbr.rel (%p14) target = $region8
  $region5: #{vit_block.3} parent=0 // loop_body
    %s18 = ssub.s32 %s13, 1
    %s19 = ssub.s32 %s13, 2
    %s20 = sadd.s32 %s13, 1
    %s21 = ssub.s32 %s13, %s20
    %p22 = scmp.eq.s32.totalorder %s21, 0
    %s24 = sadd.s32 %s23, 1
    %s25 = scalar_select %p22, %s23, %s24
    %p28 = pneg %p22
    %p29 = scmp.eq.s32.totalorder %s13, 1
    %p30 = por %p28, %p29
    %p31 = scmp.ne.s32.totalorder %s23, %s26
    %p32 = scmp.eq.s32.totalorder %s13, 0
    %p33 = por %p31, %p32
    %p34 = scmp.ne.s32.totalorder %s23, %s26
    %p35 = scmp.eq.s32.totalorder %s18, 1
    %p36 = por %p34, %p35
    %p37 = scmp.ne.s32.totalorder %s26, %s27
    %p38 = scmp.eq.s32.totalorder %s18, 0
    %p39 = por %p37, %p38
    %p40 = scmp.ne.s32.totalorder %s26, %s27
    %p41 = scmp.eq.s32.totalorder %s19, 1
    %p42 = por %p40, %p41
    %p44 = scmp.ne.s32.totalorder %s27, %s43
    %p45 = scmp.eq.s32.totalorder %s19, 0
    %p46 = por %p44, %p45
    %s48 = sadd.s32 %s47, 1
    %p51 = scmp.eq.s32.totalorder %s13, 1
    %p52 = scmp.ne.s32.totalorder %s47, %s49
    %p53 = scmp.eq.s32.totalorder %s13, 0
    %p54 = por %p52, %p53
    %p55 = scmp.ne.s32.totalorder %s47, %s49
    %p56 = scmp.eq.s32.totalorder %s18, 1
    %p57 = por %p55, %p56
    %p58 = scmp.ne.s32.totalorder %s49, %s50
    %p59 = scmp.eq.s32.totalorder %s18, 0
    %p60 = por %p58, %p59
    %p61 = scmp.ne.s32.totalorder %s49, %s50
    %p62 = scmp.eq.s32.totalorder %s19, 1
    %p63 = por %p61, %p62
    %p65 = scmp.ne.s32.totalorder %s50, %s64
    %p66 = scmp.eq.s32.totalorder %s19, 0
    %p67 = por %p65, %p66
    %s69 = sadd.s32 %s68, 1
    %p72 = scmp.eq.s32.totalorder %s13, 1
    %p73 = scmp.ne.s32.totalorder %s68, %s70
    %p74 = scmp.eq.s32.totalorder %s13, 0
    %p75 = por %p73, %p74
    %p76 = scmp.ne.s32.totalorder %s68, %s70
    %p77 = scmp.eq.s32.totalorder %s18, 1
    %p78 = por %p76, %p77
    %p79 = scmp.ne.s32.totalorder %s70, %s71
    %p80 = scmp.eq.s32.totalorder %s18, 0
    %p81 = por %p79, %p80
    %p82 = scmp.ne.s32.totalorder %s70, %s71
    %p83 = scmp.eq.s32.totalorder %s19, 1
    %p84 = por %p82, %p83
    %p86 = scmp.ne.s32.totalorder %s71, %s85
    %p87 = scmp.eq.s32.totalorder %s19, 0
    %p88 = por %p86, %p87
    %s90 = sadd.s32 %s89, 1
    %p93 = scmp.eq.s32.totalorder %s13, 1
    %p94 = scmp.ne.s32.totalorder %s89, %s91
    %p95 = scmp.eq.s32.totalorder %s13, 0
    %p96 = por %p94, %p95
    %p97 = scmp.ne.s32.totalorder %s89, %s91
    %p98 = scmp.eq.s32.totalorder %s18, 1
    %p99 = por %p97, %p98
    %p100 = scmp.ne.s32.totalorder %s91, %s92
    %p101 = scmp.eq.s32.totalorder %s18, 0
    %p102 = por %p100, %p101
    %p103 = scmp.ne.s32.totalorder %s91, %s92
    %p104 = scmp.eq.s32.totalorder %s19, 1
    %p105 = por %p103, %p104
    %p107 = scmp.ne.s32.totalorder %s92, %s106
    %p108 = scmp.eq.s32.totalorder %s19, 0
    %p109 = por %p107, %p108
    %s111 = sadd.s32 %s110, 1
    %p114 = scmp.eq.s32.totalorder %s13, 1
    %p115 = scmp.ne.s32.totalorder %s110, %s112
    %p116 = scmp.eq.s32.totalorder %s13, 0
    %p117 = por %p115, %p116
    %p118 = scmp.ne.s32.totalorder %s110, %s112
    %p119 = scmp.eq.s32.totalorder %s18, 1
    %p120 = por %p118, %p119
    %p121 = scmp.ne.s32.totalorder %s112, %s113
    %p122 = scmp.eq.s32.totalorder %s18, 0
    %p123 = por %p121, %p122
    %p124 = scmp.ne.s32.totalorder %s112, %s113
    %p125 = scmp.eq.s32.totalorder %s19, 1
    %p126 = por %p124, %p125
    %p128 = scmp.ne.s32.totalorder %s113, %s127
    %p129 = scmp.eq.s32.totalorder %s19, 0
    %p130 = por %p128, %p129
    %s132 = sadd.s32 %s131, 1
    %p135 = scmp.eq.s32.totalorder %s13, 1
    %p136 = scmp.ne.s32.totalorder %s131, %s133
    %p137 = scmp.eq.s32.totalorder %s13, 0
    %p138 = por %p136, %p137
    %p139 = scmp.ne.s32.totalorder %s131, %s133
    %p140 = scmp.eq.s32.totalorder %s18, 1
    %p141 = por %p139, %p140
    %p142 = scmp.ne.s32.totalorder %s133, %s134
    %p143 = scmp.eq.s32.totalorder %s18, 0
    %p144 = por %p142, %p143
    %p145 = scmp.ne.s32.totalorder %s133, %s134
    %p146 = scmp.eq.s32.totalorder %s19, 1
    %p147 = por %p145, %p146
    %p149 = scmp.ne.s32.totalorder %s134, %s148
    %p150 = scmp.eq.s32.totalorder %s19, 0
    %p151 = por %p149, %p150
    %s153 = sadd.s32 %s152, 1
    %p156 = scmp.eq.s32.totalorder %s13, 1
    %p157 = scmp.ne.s32.totalorder %s152, %s154
    %p158 = scmp.eq.s32.totalorder %s13, 0
    %p159 = por %p157, %p158
    %p160 = scmp.ne.s32.totalorder %s152, %s154
    %p161 = scmp.eq.s32.totalorder %s18, 1
    %p162 = por %p160, %p161
    %p163 = scmp.ne.s32.totalorder %s154, %s155
    %p164 = scmp.eq.s32.totalorder %s18, 0
    %p165 = por %p163, %p164
    %p166 = scmp.ne.s32.totalorder %s154, %s155
    %p167 = scmp.eq.s32.totalorder %s19, 1
    %p168 = por %p166, %p167
    %p170 = scmp.ne.s32.totalorder %s155, %s169
    %p171 = scmp.eq.s32.totalorder %s19, 0
    %p172 = por %p170, %p171
    %s173 = ssub.s32 %s13, %s20
    %p174 = scmp.eq.s32.totalorder %s173, 0
    %s176 = sadd.s32 %s175, 1
    %s177 = scalar_select %p174, %s175, %s176
    %p180 = pneg %p174
    %p181 = scmp.eq.s32.totalorder %s13, 1
    %p182 = por %p180, %p181
    %p183 = scmp.ne.s32.totalorder %s175, %s178
    %p184 = scmp.eq.s32.totalorder %s13, 0
    %p185 = por %p183, %p184
    %p186 = scmp.ne.s32.totalorder %s175, %s178
    %p187 = scmp.eq.s32.totalorder %s18, 1
    %p188 = por %p186, %p187
    %p189 = scmp.ne.s32.totalorder %s178, %s179
    %p190 = scmp.eq.s32.totalorder %s18, 0
    %p191 = por %p189, %p190
    %p192 = scmp.ne.s32.totalorder %s178, %s179
    %p193 = scmp.eq.s32.totalorder %s19, 1
    %p194 = por %p192, %p193
    %p196 = scmp.ne.s32.totalorder %s179, %s195
    %p197 = scmp.eq.s32.totalorder %s19, 0
    %p198 = por %p196, %p197
    %p199 = scmp.le.s32.totalorder 1, %s13
    %p200 = scmp.lt.s32.totalorder %s13, 3
    %p201 = pnand %p199, %p200
    %p202 = pneg %p201
    // Predicated region
    $region9: #{vit_block.3} parent=5 // pred_check
      _
    $region10: #{vit_block.3} parent=5 // pred_check_branch
      %204 = sbr.rel (%p201) target = $region12
    $region11: #{vit_block.3} parent=5 // pred_region
      %s205 = ssub.s32 %s13, 1
      // Predicated region
      $region13: #{vit_block.3} parent=11 // pred_check
        %p206 = pneg %p60
      $region14: #{vit_block.3} parent=11 // pred_check_branch
        %208 = sbr.rel (%p206) target = $region16
      $region15: #{vit_block.3} parent=11 // pred_region
        _
      $region16: #{vit_block.3} parent=11 // pred_fallthru
        _
      // Predicated region
      $region17: #{vit_block.3} parent=11 // pred_check
        %p209 = pneg %p81
      $region18: #{vit_block.3} parent=11 // pred_check_branch
        %211 = sbr.rel (%p209) target = $region20
      $region19: #{vit_block.3} parent=11 // pred_region
        _
      $region20: #{vit_block.3} parent=11 // pred_fallthru
        _
      // Predicated region
      $region21: #{vit_block.3} parent=11 // pred_check
        %p212 = pneg %p102
      $region22: #{vit_block.3} parent=11 // pred_check_branch
        %214 = sbr.rel (%p212) target = $region24
      $region23: #{vit_block.3} parent=11 // pred_region
        _
      $region24: #{vit_block.3} parent=11 // pred_fallthru
        _
      // Predicated region
      $region25: #{vit_block.3} parent=11 // pred_check
        %p215 = pneg %p123
      $region26: #{vit_block.3} parent=11 // pred_check_branch
        %217 = sbr.rel (%p215) target = $region28
      $region27: #{vit_block.3} parent=11 // pred_region
        _
      $region28: #{vit_block.3} parent=11 // pred_fallthru
        _
      // Predicated region
      $region29: #{vit_block.3} parent=11 // pred_check
        %p218 = pneg %p144
      $region30: #{vit_block.3} parent=11 // pred_check_branch
        %220 = sbr.rel (%p218) target = $region32
      $region31: #{vit_block.3} parent=11 // pred_region
        _
      $region32: #{vit_block.3} parent=11 // pred_fallthru
        _
      // Predicated region
      $region33: #{vit_block.3} parent=11 // pred_check
        %p221 = pneg %p165
      $region34: #{vit_block.3} parent=11 // pred_check_branch
        %223 = sbr.rel (%p221) target = $region36
      $region35: #{vit_block.3} parent=11 // pred_region
        _
      $region36: #{vit_block.3} parent=11 // pred_fallthru
        _
    $region12: #{vit_block.3} parent=5 // pred_fallthru
      _
    %p224 = scmp.lt.s32.totalorder %s13, 2
    // Predicated region
    $region37: #{vit_block.3} parent=5 // pred_check
      %p225 = pneg %p224
    $region38: #{vit_block.3} parent=5 // pred_check_branch
      %227 = sbr.rel (%p225) target = $region40
    $region39: #{vit_block.3} parent=5 // pred_region
      // Predicated region
      $region41: #{vit_block.3} parent=39 // pred_check
        %p228 = pneg %p33
      $region42: #{vit_block.3} parent=39 // pred_check_branch
        %230 = sbr.rel (%p228) target = $region44
      $region43: #{vit_block.3} parent=39 // pred_region
        %p231 = scmp.lt.s32.totalorder %s13, 1
        %s232 = scalar_select %p231, %s13, 1
        %s233 = smul.addr %s232, 4
        %s234 = smul.addr %s233, 8
        %s235 = scalar_lea.vmem %s0, %s234
      $region44: #{vit_block.3} parent=39 // pred_fallthru
        _
    $region40: #{vit_block.3} parent=5 // pred_fallthru
      _
    %p236 = scmp.le.s32.totalorder 1, %s13
    %p237 = scmp.lt.s32.totalorder %s13, 3
    %p238 = pnand %p236, %p237
    %p239 = pneg %p238
    // Predicated region
    $region45: #{vit_block.3} parent=5 // pred_check
      _
    $region46: #{vit_block.3} parent=5 // pred_check_branch
      %241 = sbr.rel (%p238) target = $region48
    $region47: #{vit_block.3} parent=5 // pred_region
      %s242 = ssub.s32 %s13, 1
      %p243 = scmp.lt.s32.totalorder %s18, 1
      %s244 = scalar_select %p243, %s18, 1
      %s245 = smul.addr %s244, 4
      %s246 = smul.addr %s245, 8
      %s247 = scalar_lea.vmem %s0, %s246
      %p248 = pneg %p39
      %p249 = pneg %p36
      %p250 = pneg %p60
      %p251 = pneg %p57
      %p252 = pneg %p81
      %p253 = pneg %p78
      %p254 = pneg %p102
      %p255 = pneg %p99
      %p256 = pneg %p123
      %p257 = pneg %p120
      %p258 = pneg %p144
      %p259 = pneg %p141
      %p260 = pneg %p165
      %p261 = pneg %p162
      %p262 = pneg %p191
      %p263 = pneg %p188
      %p264 = scmp.lt.s32.totalorder %s18, 1
      %s265 = scalar_select %p264, %s18, 1
      %s266 = smul.addr %s265, 4
      %s267 = smul.addr %s266, 8
      %s268 = scalar_lea.vmem %s7, %s267
      %p269 = scmp.lt.s32.totalorder %s18, 1
      %s270 = scalar_select %p269, %s18, 1
      %s271 = smul.addr %s270, 4
      %s272 = smul.addr %s271, 8
      %s273 = scalar_lea.vmem %s0, %s272
      %p274 = scmp.lt.s32.totalorder %s18, 1
      %s275 = scalar_select %p274, %s18, 1
      %s276 = smul.addr %s275, 4
      %s277 = smul.addr %s276, 8
      %s278 = scalar_lea.vmem %s7, %s277
      %v280 = vld [vmem:[%s273] sm:$0xff]
      %v281 = vld [vmem:[%s273 + $0x8] sm:$0xff]
      %v282 = vld [vmem:[%s273 + $0x10] sm:$0xff]
      %v283 = vld [vmem:[%s273 + $0x18] sm:$0xff]
      %vm284 = vcmask 64512
      %v285 = vsel %vm284, %v280, 0.0
      %v286 = vsel %vm284, %v281, 0.0
      %v287 = vadd.f32 %v285, %v286
      %v288 = vsel %vm284, %v282, 0.0
      %v289 = vadd.f32 %v287, %v288
      %v290 = vsel %vm284, %v283, 0.0
      %v291 = vadd.f32 %v289, %v290
      %v292 = vrot.slane %v291, 4
      %v293 = vadd.f32 %v291, %v292
      %v294 = vrot.slane %v293, 2
      %v295 = vadd.f32 %v293, %v294
      %v296 = vrot.slane %v295, 1
      %v297 = vadd.f32 %v295, %v296
      %v298 = vrcp.pop 32.0
      %v299 = vmul.f32 32.0, %v298
      %v300 = vsub.f32 1.0, %v299
      %v301 = vmul.f32 %v298, %v300
      %v302 = vadd.f32 %v298, %v301
      %vm303 = vweird.f32 %v298
      %v304 = vsel %vm303, %v298, %v302
      %v305 = vmul.f32 %v297, %v304
      %v306 = vsub.f32 %v280, %v305
      %v307 = vsub.f32 %v281, %v305
      %v308 = vsub.f32 %v282, %v305
      %v309 = vsub.f32 %v283, %v305
      %v310 = vmul.f32 %v306, %v306
      %v311 = vmul.f32 %v307, %v307
      %v312 = vmul.f32 %v308, %v308
      %v313 = vmul.f32 %v309, %v309
      %v314 = vsel %vm284, %v310, 0.0
      %v315 = vsel %vm284, %v311, 0.0
      %v316 = vadd.f32 %v314, %v315
      %v317 = vsel %vm284, %v312, 0.0
      %v318 = vadd.f32 %v316, %v317
      %v319 = vsel %vm284, %v313, 0.0
      %v320 = vadd.f32 %v318, %v319
      %v321 = vrot.slane %v320, 4
      %v322 = vadd.f32 %v320, %v321
      %v323 = vrot.slane %v322, 2
      %v324 = vadd.f32 %v322, %v323
      %v325 = vrot.slane %v324, 1
      %v326 = vadd.f32 %v324, %v325
      %v327 = vmul.f32 %v326, %v304
      %v328 = vadd.f32 %v327, 1e-05
      %v329 = vrsqrt.pop %v328
      %v330 = vmul.f32 %v329, %v328
      %v331 = vmul.f32 %v330, %v329
      %v332 = vmul.f32 0.5, %v331
      %v333 = vsub.f32 1.5, %v332
      %v334 = vmul.f32 %v329, %v333
      %vm335 = vweird.f32 %v328
      %vm336 = vweird.f32 %v329
      %vm337 = vmor %vm335, %vm336
      %v338 = vsel %vm337, %v329, %v334
      %v339 = vmul.f32 %v306, %v338
      %v340 = vmul.f32 %v307, %v338
      %v341 = vmul.f32 %v308, %v338
      %v342 = vmul.f32 %v309, %v338
      %v343 = vld [vmem:[%s1] sm:$0xff]
      %v344 = vld [vmem:[%s1 + $0x8] sm:$0xff]
      %v345 = vld [vmem:[%s1 + $0x10] sm:$0xff]
      %v346 = vld [vmem:[%s1 + $0x18] sm:$0xff]
      %348 = vset.pattern.permute.xlu0 0
      %349 = vperm.xlu0 %348, %v343
      %v350 = vpop.permute.xlu0 %349
      %353 = vset.pattern.permute.xlu0 0
      %354 = vperm.xlu0 %353, %v344
      %v355 = vpop.permute.xlu0 %354
      %358 = vset.pattern.permute.xlu0 0
      %359 = vperm.xlu0 %358, %v345
      %v360 = vpop.permute.xlu0 %359
      %363 = vset.pattern.permute.xlu0 0
      %364 = vperm.xlu0 %363, %v346
      %v365 = vpop.permute.xlu0 %364
      %v367 = vmul.f32 %v339, %v350
      %v368 = vmul.f32 %v340, %v355
      %v369 = vmul.f32 %v341, %v360
      %v370 = vmul.f32 %v342, %v365
      %v371 = vld [vmem:[%s2] sm:$0xff]
      %v372 = vld [vmem:[%s2 + $0x8] sm:$0xff]
      %v373 = vld [vmem:[%s2 + $0x10] sm:$0xff]
      %v374 = vld [vmem:[%s2 + $0x18] sm:$0xff]
      %376 = vset.pattern.permute.xlu0 0
      %377 = vperm.xlu0 %376, %v371
      %v378 = vpop.permute.xlu0 %377
      %381 = vset.pattern.permute.xlu0 0
      %382 = vperm.xlu0 %381, %v372
      %v383 = vpop.permute.xlu0 %382
      %386 = vset.pattern.permute.xlu0 0
      %387 = vperm.xlu0 %386, %v373
      %v388 = vpop.permute.xlu0 %387
      %391 = vset.pattern.permute.xlu0 0
      %392 = vperm.xlu0 %391, %v374
      %v393 = vpop.permute.xlu0 %392
      %v395 = vadd.f32 %v367, %v378
      %v396 = vadd.f32 %v368, %v383
      %v397 = vadd.f32 %v369, %v388
      %v398 = vadd.f32 %v370, %v393
      %v399 = vld [vmem:[%s3] sm:$0xf]
      %v400 = vld [vmem:[%s3 + $0x4] sm:$0xf]
      %v401 = vld [vmem:[%s3 + $0x8] sm:$0xf]
      %v402 = vld [vmem:[%s3 + $0xc] sm:$0xf]
      %v403 = vld [vmem:[%s3 + $0x10] sm:$0xf]
      %v404 = vld [vmem:[%s3 + $0x14] sm:$0xf]
      %v405 = vld [vmem:[%s3 + $0x18] sm:$0xf]
      %v406 = vld [vmem:[%s3 + $0x1c] sm:$0xf]
      %v407 = vld [vmem:[%s3 + $0x20] sm:$0xf]
      %v408 = vld [vmem:[%s3 + $0x24] sm:$0xf]
      %v409 = vld [vmem:[%s3 + $0x28] sm:$0xf]
      %v410 = vld [vmem:[%s3 + $0x2c] sm:$0xf]
      %v411 = vpack.c.bf16 %v396, %v395
      %v412 = vpack.c.bf16 %v398, %v397
      %v413 = vld [vmem:[%s4] sm:$0xff]
      %v414 = vld [vmem:[%s4 + $0x8] sm:$0xff]
      %v415 = vld [vmem:[%s4 + $0x10] sm:$0xff]
      %v416 = vld [vmem:[%s4 + $0x18] sm:$0xff]
      %v417 = vld [vmem:[%s4 + $0x20] sm:$0xff]
      %v418 = vld [vmem:[%s4 + $0x28] sm:$0xff]
      %v419 = vld [vmem:[%s4 + $0x30] sm:$0xff]
      %v420 = vld [vmem:[%s4 + $0x38] sm:$0xff]
      %v421 = vld [vmem:[%s4 + $0x40] sm:$0xff]
      %v422 = vld [vmem:[%s4 + $0x48] sm:$0xff]
      %v423 = vld [vmem:[%s4 + $0x50] sm:$0xff]
      %v424 = vld [vmem:[%s4 + $0x58] sm:$0xff]
      %426 = vset.pattern.permute.xlu0 0
      %427 = vperm.xlu0 %426, %v413
      %v428 = vpop.permute.xlu0 %427
      %431 = vset.pattern.permute.xlu0 0
      %432 = vperm.xlu0 %431, %v414
      %v433 = vpop.permute.xlu0 %432
      %436 = vset.pattern.permute.xlu0 0
      %437 = vperm.xlu0 %436, %v415
      %v438 = vpop.permute.xlu0 %437
      %441 = vset.pattern.permute.xlu0 0
      %442 = vperm.xlu0 %441, %v416
      %v443 = vpop.permute.xlu0 %442
      %446 = vset.pattern.permute.xlu0 0
      %447 = vperm.xlu0 %446, %v417
      %v448 = vpop.permute.xlu0 %447
      %451 = vset.pattern.permute.xlu0 0
      %452 = vperm.xlu0 %451, %v418
      %v453 = vpop.permute.xlu0 %452
      %456 = vset.pattern.permute.xlu0 0
      %457 = vperm.xlu0 %456, %v419
      %v458 = vpop.permute.xlu0 %457
      %461 = vset.pattern.permute.xlu0 0
      %462 = vperm.xlu0 %461, %v420
      %v463 = vpop.permute.xlu0 %462
      %466 = vset.pattern.permute.xlu0 0
      %467 = vperm.xlu0 %466, %v421
      %v468 = vpop.permute.xlu0 %467
      %471 = vset.pattern.permute.xlu0 0
      %472 = vperm.xlu0 %471, %v422
      %v473 = vpop.permute.xlu0 %472
      %476 = vset.pattern.permute.xlu0 0
      %477 = vperm.xlu0 %476, %v423
      %v478 = vpop.permute.xlu0 %477
      %481 = vset.pattern.permute.xlu0 0
      %482 = vperm.xlu0 %481, %v424
      %v483 = vpop.permute.xlu0 %482
      %v497 = vunpack.c.l.b16 %v399
      %v498 = vunpack.c.l.b16 %v400
      %v499 = vunpack.c.l.b16 %v401
      %v500 = vunpack.c.l.b16 %v402
      %v501 = vunpack.c.l.b16 %v403
      %v502 = vunpack.c.l.b16 %v404
      %v503 = vunpack.c.l.b16 %v405
      %v504 = vunpack.c.l.b16 %v406
      %v505 = vunpack.c.l.b16 %v407
      %v506 = vunpack.c.l.b16 %v408
      %v507 = vunpack.c.l.b16 %v409
      %v508 = vunpack.c.l.b16 %v410
      %v509 = vpack.c.b16 %v498, %v497
      %v510 = vpack.c.b16 %v500, %v499
      %v511 = vpack.c.b16 %v502, %v501
      %v512 = vpack.c.b16 %v504, %v503
      %v513 = vpack.c.b16 %v506, %v505
      %v514 = vpack.c.b16 %v508, %v507
      %vm515 = vcmask 261120
      %v517 = vsel %vm515, %v509, 0
      %v520 = vsel %vm515, %v510, 0
      %v523 = vsel %vm515, %v511, 0
      %v526 = vsel %vm515, %v512, 0
      %v529 = vsel %vm515, %v513, 0
      %v532 = vsel %vm515, %v514, 0
      %534 = vmatpush.bf16.msra.mxu0 0
      %535 = vmatpush.bf16.msra.mxu0 0
      %536 = vmatpush.bf16.msra.mxu0 0
      %537 = vmatpush.bf16.msra.mxu0 0
      %538 = vmatpush.bf16.msra.mxu0 0
      %539 = vmatpush.bf16.msra.mxu0 0
      %540 = vmatpush.bf16.msra.mxu0 %v412
      %541 = vmatpush.bf16.msra.mxu0 %v411
      %542 = vmatmul.bf16.gmra.mxu0 %v517
      %v543 = vpop.f32.mrf.mxu0
      %v544 = vadd.f32 %v428, %v543
      %v545 = vpop.f32.mrf.mxu0
      %v546 = vadd.f32 %v433, %v545
      %547 = vmatmul.bf16.gmra.mxu0 %v520
      %v548 = vpop.f32.mrf.mxu0
      %v549 = vadd.f32 %v438, %v548
      %v550 = vpop.f32.mrf.mxu0
      %v551 = vadd.f32 %v443, %v550
      %552 = vmatmul.bf16.gmra.mxu0 %v523
      %v553 = vpop.f32.mrf.mxu0
      %v554 = vadd.f32 %v448, %v553
      %v555 = vpop.f32.mrf.mxu0
      %v556 = vadd.f32 %v453, %v555
      %557 = vmatmul.bf16.gmra.mxu0 %v526
      %v558 = vpop.f32.mrf.mxu0
      %v559 = vadd.f32 %v458, %v558
      %v560 = vpop.f32.mrf.mxu0
      %v561 = vadd.f32 %v463, %v560
      %562 = vmatmul.bf16.gmra.mxu0 %v529
      %v563 = vpop.f32.mrf.mxu0
      %v564 = vadd.f32 %v468, %v563
      %v565 = vpop.f32.mrf.mxu0
      %v566 = vadd.f32 %v473, %v565
      %567 = vmatmul.bf16.gmra.mxu0 %v532
      %v568 = vpop.f32.mrf.mxu0
      %v569 = vadd.f32 %v478, %v568
      %v570 = vpop.f32.mrf.mxu0
      %v571 = vadd.f32 %v483, %v570
      %572 = vdwg.mxu0
      %v573 = vpack.c.bf16 %v544, %v544
      %v574 = vpack.c.bf16 %v546, %v546
      %v575 = vpack.c.bf16 %v549, %v549
      %v576 = vpack.c.bf16 %v551, %v551
      %v577 = vpack.c.bf16 %v554, %v554
      %v578 = vpack.c.bf16 %v556, %v556
      %v579 = vpack.c.bf16 %v559, %v559
      %v580 = vpack.c.bf16 %v561, %v561
      %581 = vxpose.xlu0.c.b16.start [1/8] %v573, 128
      %582 = vxpose.xlu0.c.b16.cont [2/8] 0, 128
      %583 = vxpose.xlu0.c.b16.cont [3/8] 0, 128
      %584 = vxpose.xlu0.c.b16.cont [4/8] 0, 128
      %585 = vxpose.xlu0.c.b16.cont [5/8] 0, 128
      %586 = vxpose.xlu0.c.b16.cont [6/8] 0, 128
      %587 = vxpose.xlu0.c.b16.cont [7/8] 0, 128
      %588 = vxpose.xlu0.c.b16.end [8/8] 0, 128
      %v589 = vpop.trf.xlu0
      %v590 = vpop.trf.xlu0
      %v591 = vpop.trf.xlu0
      %v592 = vpop.trf.xlu0
      %v593 = vpop.trf.xlu0
      %v594 = vpop.trf.xlu0
      %v595 = vpop.trf.xlu0
      %v596 = vpop.trf.xlu0
      %v598 = vsel %vm284, %v589, 0
      %vm600 = vcmask 1043456
      %v602 = vsel %vm600, %v577, 0
      %604 = vmatpush.bf16.msra.mxu0 0
      %605 = vmatpush.bf16.msra.mxu0 0
      %606 = vmatpush.bf16.msra.mxu0 0
      %607 = vmatpush.bf16.msra.mxu0 0
      %608 = vmatpush.bf16.msra.mxu0 0
      %609 = vmatpush.bf16.msra.mxu0 0
      %610 = vmatpush.bf16.msra.mxu0 0
      %611 = vmatpush.bf16.msra.mxu0 %v602
      %612 = vmatmul.bf16.gmra.mxu0 %v598
      %v613 = vpop.f32.mrf.mxu0
      %v614 = vadd.f32 0.0, %v613
      %v615 = vpop.f32.mrf.mxu0
      %616 = vdwg.mxu0
      %617 = vxpose.xlu0.c.b16.start [1/8] %v574, 128
      %618 = vxpose.xlu0.c.b16.cont [2/8] 0, 128
      %619 = vxpose.xlu0.c.b16.cont [3/8] 0, 128
      %620 = vxpose.xlu0.c.b16.cont [4/8] 0, 128
      %621 = vxpose.xlu0.c.b16.cont [5/8] 0, 128
      %622 = vxpose.xlu0.c.b16.cont [6/8] 0, 128
      %623 = vxpose.xlu0.c.b16.cont [7/8] 0, 128
      %624 = vxpose.xlu0.c.b16.end [8/8] 0, 128
      %v625 = vpop.trf.xlu0
      %v626 = vpop.trf.xlu0
      %v627 = vpop.trf.xlu0
      %v628 = vpop.trf.xlu0
      %v629 = vpop.trf.xlu0
      %v630 = vpop.trf.xlu0
      %v631 = vpop.trf.xlu0
      %v632 = vpop.trf.xlu0
      %v634 = vsel %vm284, %v625, 0
      %v637 = vsel %vm600, %v578, 0
      %639 = vmatpush.bf16.msra.mxu0 0
      %640 = vmatpush.bf16.msra.mxu0 0
      %641 = vmatpush.bf16.msra.mxu0 0
      %642 = vmatpush.bf16.msra.mxu0 0
      %643 = vmatpush.bf16.msra.mxu0 0
      %644 = vmatpush.bf16.msra.mxu0 0
      %645 = vmatpush.bf16.msra.mxu0 0
      %646 = vmatpush.bf16.msra.mxu0 %v637
      %647 = vmatmul.bf16.gmra.mxu0 %v634
      %v648 = vpop.f32.mrf.mxu0
      %v649 = vadd.f32 0.0, %v648
      %v650 = vpop.f32.mrf.mxu0
      %651 = vdwg.mxu0
      %652 = vxpose.xlu0.c.b16.start [1/8] %v575, 128
      %653 = vxpose.xlu0.c.b16.cont [2/8] 0, 128
      %654 = vxpose.xlu0.c.b16.cont [3/8] 0, 128
      %655 = vxpose.xlu0.c.b16.cont [4/8] 0, 128
      %656 = vxpose.xlu0.c.b16.cont [5/8] 0, 128
      %657 = vxpose.xlu0.c.b16.cont [6/8] 0, 128
      %658 = vxpose.xlu0.c.b16.cont [7/8] 0, 128
      %659 = vxpose.xlu0.c.b16.end [8/8] 0, 128
      %v660 = vpop.trf.xlu0
      %v661 = vpop.trf.xlu0
      %v662 = vpop.trf.xlu0
      %v663 = vpop.trf.xlu0
      %v664 = vpop.trf.xlu0
      %v665 = vpop.trf.xlu0
      %v666 = vpop.trf.xlu0
      %v667 = vpop.trf.xlu0
      %v669 = vsel %vm284, %v660, 0
      %v672 = vsel %vm600, %v579, 0
      %674 = vmatpush.bf16.msra.mxu0 0
      %675 = vmatpush.bf16.msra.mxu0 0
      %676 = vmatpush.bf16.msra.mxu0 0
      %677 = vmatpush.bf16.msra.mxu0 0
      %678 = vmatpush.bf16.msra.mxu0 0
      %679 = vmatpush.bf16.msra.mxu0 0
      %680 = vmatpush.bf16.msra.mxu0 0
      %681 = vmatpush.bf16.msra.mxu0 %v672
      %682 = vmatmul.bf16.gmra.mxu0 %v669
      %v683 = vpop.f32.mrf.mxu0
      %v684 = vadd.f32 0.0, %v683
      %v685 = vpop.f32.mrf.mxu0
      %686 = vdwg.mxu0
      %687 = vxpose.xlu0.c.b16.start [1/8] %v576, 128
      %688 = vxpose.xlu0.c.b16.cont [2/8] 0, 128
      %689 = vxpose.xlu0.c.b16.cont [3/8] 0, 128
      %690 = vxpose.xlu0.c.b16.cont [4/8] 0, 128
      %691 = vxpose.xlu0.c.b16.cont [5/8] 0, 128
      %692 = vxpose.xlu0.c.b16.cont [6/8] 0, 128
      %693 = vxpose.xlu0.c.b16.cont [7/8] 0, 128
      %694 = vxpose.xlu0.c.b16.end [8/8] 0, 128
      %v695 = vpop.trf.xlu0
      %v696 = vpop.trf.xlu0
      %v697 = vpop.trf.xlu0
      %v698 = vpop.trf.xlu0
      %v699 = vpop.trf.xlu0
      %v700 = vpop.trf.xlu0
      %v701 = vpop.trf.xlu0
      %v702 = vpop.trf.xlu0
      %v704 = vsel %vm284, %v695, 0
      %v707 = vsel %vm600, %v580, 0
      %709 = vmatpush.bf16.msra.mxu0 0
      %710 = vmatpush.bf16.msra.mxu0 0
      %711 = vmatpush.bf16.msra.mxu0 0
      %712 = vmatpush.bf16.msra.mxu0 0
      %713 = vmatpush.bf16.msra.mxu0 0
      %714 = vmatpush.bf16.msra.mxu0 0
      %715 = vmatpush.bf16.msra.mxu0 0
      %716 = vmatpush.bf16.msra.mxu0 %v707
      %717 = vmatmul.bf16.gmra.mxu0 %v704
      %v718 = vpop.f32.mrf.mxu0
      %v719 = vadd.f32 0.0, %v718
      %v720 = vpop.f32.mrf.mxu0
      %721 = vdwg.mxu0
      %v722 = vsel %vm284, %v614, -inf
      %723 = vmax.xlane.f32.xlu0 %v722
      %v724 = vpop.xlane.xlu0 %723
      %v725 = vsel %vm284, %v649, -inf
      %726 = vmax.xlane.f32.xlu0 %v725
      %v727 = vpop.xlane.xlu0 %726
      %v728 = vsel %vm284, %v684, -inf
      %729 = vmax.xlane.f32.xlu0 %v728
      %v730 = vpop.xlane.xlu0 %729
      %v731 = vsel %vm284, %v719, -inf
      %732 = vmax.xlane.f32.xlu0 %v731
      %v733 = vpop.xlane.xlu0 %732
      %v734 = vsub.f32 %v614, %v724
      %v735 = vsub.f32 %v649, %v727
      %v736 = vsub.f32 %v684, %v730
      %v737 = vsub.f32 %v719, %v733
      %v738 = vmul.f32 %v734, 1.442695
      %v739 = vpow.pop %v738
      %v740 = vmul.f32 %v735, 1.442695
      %v741 = vpow.pop %v740
      %v742 = vmul.f32 %v736, 1.442695
      %v743 = vpow.pop %v742
      %v744 = vmul.f32 %v737, 1.442695
      %v745 = vpow.pop %v744
      %v746 = vsel %vm284, %v739, 0.0
      %747 = vadd.xlane.f32.xlu0 %v746
      %v748 = vpop.xlane.xlu0 %747
      %v749 = vsel %vm284, %v741, 0.0
      %750 = vadd.xlane.f32.xlu0 %v749
      %v751 = vpop.xlane.xlu0 %750
      %v752 = vsel %vm284, %v743, 0.0
      %753 = vadd.xlane.f32.xlu0 %v752
      %v754 = vpop.xlane.xlu0 %753
      %v755 = vsel %vm284, %v745, 0.0
      %756 = vadd.xlane.f32.xlu0 %v755
      %v757 = vpop.xlane.xlu0 %756
      %v758 = vrcp.pop %v748
      %v759 = vmul.f32 %v748, %v758
      %v760 = vsub.f32 1.0, %v759
      %v761 = vmul.f32 %v758, %v760
      %v762 = vadd.f32 %v758, %v761
      %vm763 = vweird.f32 %v748
      %vm764 = vweird.f32 %v758
      %vm765 = vmor %vm763, %vm764
      %v766 = vsel %vm765, %v758, %v762
      %v767 = vand.u32 2147483647, %v748
      %vm768 = vcmp.eq.f32.partialorder %v767, 8.507059e+37
      %v769 = vand.u32 %v748, 2147483648
      %v770 = vor.u32 1.1754944e-38, %v769
      %v771 = vsel %vm768, %v770, %v766
      %v772 = vrcp.pop %v751
      %v773 = vmul.f32 %v751, %v772
      %v774 = vsub.f32 1.0, %v773
      %v775 = vmul.f32 %v772, %v774
      %v776 = vadd.f32 %v772, %v775
      %vm777 = vweird.f32 %v751
      %vm778 = vweird.f32 %v772
      %vm779 = vmor %vm777, %vm778
      %v780 = vsel %vm779, %v772, %v776
      %v781 = vand.u32 2147483647, %v751
      %vm782 = vcmp.eq.f32.partialorder %v781, 8.507059e+37
      %v783 = vand.u32 %v751, 2147483648
      %v784 = vor.u32 1.1754944e-38, %v783
      %v785 = vsel %vm782, %v784, %v780
      %v786 = vrcp.pop %v754
      %v787 = vmul.f32 %v754, %v786
      %v788 = vsub.f32 1.0, %v787
      %v789 = vmul.f32 %v786, %v788
      %v790 = vadd.f32 %v786, %v789
      %vm791 = vweird.f32 %v754
      %vm792 = vweird.f32 %v786
      %vm793 = vmor %vm791, %vm792
      %v794 = vsel %vm793, %v786, %v790
      %v795 = vand.u32 2147483647, %v754
      %vm796 = vcmp.eq.f32.partialorder %v795, 8.507059e+37
      %v797 = vand.u32 %v754, 2147483648
      %v798 = vor.u32 1.1754944e-38, %v797
      %v799 = vsel %vm796, %v798, %v794
      %v800 = vrcp.pop %v757
      %v801 = vmul.f32 %v757, %v800
      %v802 = vsub.f32 1.0, %v801
      %v803 = vmul.f32 %v800, %v802
      %v804 = vadd.f32 %v800, %v803
      %vm805 = vweird.f32 %v757
      %vm806 = vweird.f32 %v800
      %vm807 = vmor %vm805, %vm806
      %v808 = vsel %vm807, %v800, %v804
      %v809 = vand.u32 2147483647, %v757
      %vm810 = vcmp.eq.f32.partialorder %v809, 8.507059e+37
      %v811 = vand.u32 %v757, 2147483648
      %v812 = vor.u32 1.1754944e-38, %v811
      %v813 = vsel %vm810, %v812, %v808
      %v814 = vmul.f32 %v739, %v771
      %v815 = vmul.f32 %v741, %v785
      %v816 = vmul.f32 %v743, %v799
      %v817 = vmul.f32 %v745, %v813
      %v818 = vpack.c.bf16 %v564, %v564
      %v819 = vpack.c.bf16 %v566, %v566
      %v820 = vpack.c.bf16 %v569, %v569
      %v821 = vpack.c.bf16 %v571, %v571
      %v822 = vpack.c.bf16 %v814, %v814
      %v823 = vpack.c.bf16 %v815, %v815
      %v824 = vpack.c.bf16 %v816, %v816
      %v825 = vpack.c.bf16 %v817, %v817
      %v827 = vsel %vm284, %v818, 0
      %v830 = vsel %vm284, %v822, 0
      %832 = vmatpush.bf16.xpose.msra.mxu0 0
      %833 = vmatpush.bf16.xpose.msra.mxu0 0
      %834 = vmatpush.bf16.xpose.msra.mxu0 0
      %835 = vmatpush.bf16.xpose.msra.mxu0 0
      %836 = vmatpush.bf16.xpose.msra.mxu0 0
      %837 = vmatpush.bf16.xpose.msra.mxu0 0
      %838 = vmatpush.bf16.xpose.msra.mxu0 0
      %839 = vmatpush.bf16.xpose.msra.mxu0 %v830
      %840 = vmatmul.bf16.gmra.mxu0 %v827
      %v841 = vpop.f32.mrf.mxu0
      %v842 = vadd.f32 0.0, %v841
      %v843 = vpop.f32.mrf.mxu0
      %844 = vdwg.mxu0
      %v846 = vsel %vm284, %v819, 0
      %v849 = vsel %vm284, %v823, 0
      %851 = vmatpush.bf16.xpose.msra.mxu0 0
      %852 = vmatpush.bf16.xpose.msra.mxu0 0
      %853 = vmatpush.bf16.xpose.msra.mxu0 0
      %854 = vmatpush.bf16.xpose.msra.mxu0 0
      %855 = vmatpush.bf16.xpose.msra.mxu0 0
      %856 = vmatpush.bf16.xpose.msra.mxu0 0
      %857 = vmatpush.bf16.xpose.msra.mxu0 0
      %858 = vmatpush.bf16.xpose.msra.mxu0 %v849
      %859 = vmatmul.bf16.gmra.mxu0 %v846
      %v860 = vpop.f32.mrf.mxu0
      %v861 = vadd.f32 0.0, %v860
      %v862 = vpop.f32.mrf.mxu0
      %863 = vdwg.mxu0
      %v865 = vsel %vm284, %v820, 0
      %v868 = vsel %vm284, %v824, 0
      %870 = vmatpush.bf16.xpose.msra.mxu0 0
      %871 = vmatpush.bf16.xpose.msra.mxu0 0
      %872 = vmatpush.bf16.xpose.msra.mxu0 0
      %873 = vmatpush.bf16.xpose.msra.mxu0 0
      %874 = vmatpush.bf16.xpose.msra.mxu0 0
      %875 = vmatpush.bf16.xpose.msra.mxu0 0
      %876 = vmatpush.bf16.xpose.msra.mxu0 0
      %877 = vmatpush.bf16.xpose.msra.mxu0 %v868
      %878 = vmatmul.bf16.gmra.mxu0 %v865
      %v879 = vpop.f32.mrf.mxu0
      %v880 = vadd.f32 0.0, %v879
      %v881 = vpop.f32.mrf.mxu0
      %882 = vdwg.mxu0
      %v884 = vsel %vm284, %v821, 0
      %v887 = vsel %vm284, %v825, 0
      %889 = vmatpush.bf16.xpose.msra.mxu0 0
      %890 = vmatpush.bf16.xpose.msra.mxu0 0
      %891 = vmatpush.bf16.xpose.msra.mxu0 0
      %892 = vmatpush.bf16.xpose.msra.mxu0 0
      %893 = vmatpush.bf16.xpose.msra.mxu0 0
      %894 = vmatpush.bf16.xpose.msra.mxu0 0
      %895 = vmatpush.bf16.xpose.msra.mxu0 0
      %896 = vmatpush.bf16.xpose.msra.mxu0 %v887
      %897 = vmatmul.bf16.gmra.mxu0 %v884
      %v898 = vpop.f32.mrf.mxu0
      %v899 = vadd.f32 0.0, %v898
      %v900 = vpop.f32.mrf.mxu0
      %901 = vdwg.mxu0
      %v902 = vld [vmem:[%s5] sm:$0xf]
      %v903 = vld [vmem:[%s5 + $0x4] sm:$0xf]
      %v904 = vld [vmem:[%s5 + $0x8] sm:$0xf]
      %v905 = vld [vmem:[%s5 + $0xc] sm:$0xf]
      %v906 = vpack.c.bf16 %v861, %v842
      %v907 = vpack.c.bf16 %v899, %v880
      %v908 = vld [vmem:[%s6] sm:$0xff]
      %v909 = vld [vmem:[%s6 + $0x8] sm:$0xff]
      %v910 = vld [vmem:[%s6 + $0x10] sm:$0xff]
      %v911 = vld [vmem:[%s6 + $0x18] sm:$0xff]
      %913 = vset.pattern.permute.xlu0 0
      %914 = vperm.xlu0 %913, %v908
      %v915 = vpop.permute.xlu0 %914
      %918 = vset.pattern.permute.xlu0 0
      %919 = vperm.xlu0 %918, %v909
      %v920 = vpop.permute.xlu0 %919
      %923 = vset.pattern.permute.xlu0 0
      %924 = vperm.xlu0 %923, %v910
      %v925 = vpop.permute.xlu0 %924
      %928 = vset.pattern.permute.xlu0 0
      %929 = vperm.xlu0 %928, %v911
      %v930 = vpop.permute.xlu0 %929
      %v936 = vunpack.c.l.b16 %v902
      %v937 = vunpack.c.l.b16 %v903
      %v938 = vunpack.c.l.b16 %v904
      %v939 = vunpack.c.l.b16 %v905
      %v940 = vpack.c.b16 %v937, %v936
      %v941 = vpack.c.b16 %v939, %v938
      %v943 = vsel %vm515, %v940, 0
      %v946 = vsel %vm515, %v941, 0
      %948 = vmatpush.bf16.msra.mxu0 0
      %949 = vmatpush.bf16.msra.mxu0 0
      %950 = vmatpush.bf16.msra.mxu0 0
      %951 = vmatpush.bf16.msra.mxu0 0
      %952 = vmatpush.bf16.msra.mxu0 0
      %953 = vmatpush.bf16.msra.mxu0 0
      %954 = vmatpush.bf16.msra.mxu0 %v907
      %955 = vmatpush.bf16.msra.mxu0 %v906
      %956 = vmatmul.bf16.gmra.mxu0 %v943
      %v957 = vpop.f32.mrf.mxu0
      %v958 = vadd.f32 %v915, %v957
      %v959 = vpop.f32.mrf.mxu0
      %v960 = vadd.f32 %v920, %v959
      %961 = vmatmul.bf16.gmra.mxu0 %v946
      %v962 = vpop.f32.mrf.mxu0
      %v963 = vadd.f32 %v925, %v962
      %v964 = vpop.f32.mrf.mxu0
      %v965 = vadd.f32 %v930, %v964
      %966 = vdwg.mxu0
      %v967 = vadd.f32 %v958, %v280
      %v968 = vadd.f32 %v960, %v281
      %v969 = vadd.f32 %v963, %v282
      %v970 = vadd.f32 %v965, %v283
      %971 = vst.msk [vmem:[%s278] sm:$0xff] %vm284, %v967
      %972 = vst.msk [vmem:[%s278 + $0x8] sm:$0xff] %vm284, %v968
      %973 = vst.msk [vmem:[%s278 + $0x10] sm:$0xff] %vm284, %v969
      %974 = vst.msk [vmem:[%s278 + $0x18] sm:$0xff] %vm284, %v970
      %p975 = scmp.lt.s32.totalorder %s18, 1
      %s976 = scalar_select %p975, %s18, 1
      %s977 = smul.addr %s976, 4
      %s978 = smul.addr %s977, 8
      %s979 = scalar_lea.vmem %s7, %s978
      // Predicated region
      $region49: #{vit_block.3} parent=47 // pred_check
        %p980 = pneg %p188
      $region50: #{vit_block.3} parent=47 // pred_check_branch
        %982 = sbr.rel (%p980) target = $region52
      $region51: #{vit_block.3} parent=47 // pred_region
        _
      $region52: #{vit_block.3} parent=47 // pred_fallthru
        _
    $region48: #{vit_block.3} parent=5 // pred_fallthru
      _
    %p983 = scmp.le.s32.totalorder 2, %s13
    // Predicated region
    $region53: #{vit_block.3} parent=5 // pred_check
      %p984 = pneg %p983
    $region54: #{vit_block.3} parent=5 // pred_check_branch
      %986 = sbr.rel (%p984) target = $region56
    $region55: #{vit_block.3} parent=5 // pred_region
      %s987 = ssub.s32 %s13, 2
      // Predicated region
      $region57: #{vit_block.3} parent=55 // pred_check
        %p988 = pneg %p194
      $region58: #{vit_block.3} parent=55 // pred_check_branch
        %990 = sbr.rel (%p988) target = $region60
      $region59: #{vit_block.3} parent=55 // pred_region
        %p991 = scmp.lt.s32.totalorder %s19, 1
        %s992 = scalar_select %p991, %s19, 1
        %s993 = smul.addr %s992, 4
        %s994 = smul.addr %s993, 8
        %s995 = scalar_lea.vmem %s7, %s994
      $region60: #{vit_block.3} parent=55 // pred_fallthru
        _
    $region56: #{vit_block.3} parent=5 // pred_fallthru
      _
  $region6: #{vit_block.3} parent=0 // loop_footer
    %s17 = sadd.s32 1, %s13
  $region7: #{vit_block.3} parent=0 // loop_footer_branch
    %12 = sbr.rel target = $region3
  $region8: #{vit_block.3} parent=0 // loop_exit
    _

// kernel: vit_block.4
$region0: #{vit_block.4}
  #allocation0 [shape = 'u32[]', space=smem, size = 0x4, offset = 0x4, fixed_abs, tag = 'smem constant byte address 0x4 - core index']
  #allocation1 [shape = 'u32[72,128]{1,0:T(1,128)}', space=vmem, size = 0x9000, scoped, tag = 'internal scratch']
  %s0 = inlined_call_operand.vmem [shape: f32[2,32,8], index: 0, kind: input, shape index: {}]
  %s1 = inlined_call_operand.vmem [shape: f32[32,1], index: 1, kind: input, shape index: {}]
  %s2 = inlined_call_operand.vmem [shape: f32[32,1], index: 2, kind: input, shape index: {}]
  %s3 = inlined_call_operand.vmem [shape: bf16[64,32], index: 3, kind: input, shape index: {}]
  %s4 = inlined_call_operand.vmem [shape: f32[64,1], index: 4, kind: input, shape index: {}]
  %s5 = inlined_call_operand.vmem [shape: f32[2], index: 5, kind: output, shape index: {}]
  %s6 = sld [smem:[#allocation0]]
  $region57: #{vit_block.4} parent=0
    _
  %s8 = ssub.s32 1, %s6
  %s9 = scalar_select 0, %s8, %s6
  $region1: #{vit_block.4} parent=0
    #allocation2 [shape = 'u8[512]{0}', space=smem, size = 0x200, scoped, tag = 'output window, operand 0, single buffered']
    #allocation3 [shape = 's32[2]{0}', space=sflag, size = 0x8, scoped, tag = 'scoped memory for vit_block.4']
    %10 = vsyncpa [#allocation3], 0
    loop: start=0, step=1, limit=4
    $region2: #{vit_block.4} parent=1 // loop_pre_header
      _
    $region3: #{vit_block.4} parent=1 // loop_header
      %s12 = sphi 0, %s16
      %p13 = scmp.ge.s32.totalorder %s12, 4
      %s22 = sphi 0, %s24
      %s25 = sphi 0, %s22
      %s26 = sphi 0, %s25
      %s42 = sphi 0, %s26
      %s46 = sphi 0, %s46
      %s48 = sphi 0, %s46
      %s49 = sphi 0, %s48
      %s63 = sphi 0, %s49
      %s67 = sphi 0, %s67
      %s69 = sphi 0, %s67
      %s70 = sphi 0, %s69
      %s84 = sphi 0, %s70
      %s88 = sphi 0, %s88
      %s90 = sphi 0, %s88
      %s91 = sphi 0, %s90
      %s105 = sphi 0, %s91
      %s109 = sphi 0, %s109
      %s111 = sphi 0, %s109
      %s112 = sphi 0, %s111
      %s126 = sphi 0, %s112
      %s130 = sphi 0, %s130
      %s132 = sphi 0, %s130
      %s133 = sphi 0, %s132
      %s147 = sphi 0, %s133
    $region4: #{vit_block.4} parent=1 // loop_header_branch
      %15 = sbr.rel (%p13) target = $region8
    $region5: #{vit_block.4} parent=1 // loop_body
      %s17 = ssub.s32 %s12, 1
      %s18 = ssub.s32 %s12, 2
      %s19 = sadd.s32 %s12, 1
      %s20 = ssub.s32 %s12, %s19
      %p21 = scmp.eq.s32.totalorder %s20, 0
      %s23 = sadd.s32 %s22, 1
      %s24 = scalar_select %p21, %s22, %s23
      %p27 = pneg %p21
      %p28 = scmp.eq.s32.totalorder %s12, 1
      %p29 = por %p27, %p28
      %p30 = scmp.ne.s32.totalorder %s22, %s25
      %p31 = scmp.eq.s32.totalorder %s12, 0
      %p32 = por %p30, %p31
      %p33 = scmp.ne.s32.totalorder %s22, %s25
      %p34 = scmp.eq.s32.totalorder %s17, 1
      %p35 = por %p33, %p34
      %p36 = scmp.ne.s32.totalorder %s25, %s26
      %p37 = scmp.eq.s32.totalorder %s17, 0
      %p38 = por %p36, %p37
      %p39 = scmp.ne.s32.totalorder %s25, %s26
      %p40 = scmp.eq.s32.totalorder %s18, 1
      %p41 = por %p39, %p40
      %p43 = scmp.ne.s32.totalorder %s26, %s42
      %p44 = scmp.eq.s32.totalorder %s18, 0
      %p45 = por %p43, %p44
      %s47 = sadd.s32 %s46, 1
      %p50 = scmp.eq.s32.totalorder %s12, 1
      %p51 = scmp.ne.s32.totalorder %s46, %s48
      %p52 = scmp.eq.s32.totalorder %s12, 0
      %p53 = por %p51, %p52
      %p54 = scmp.ne.s32.totalorder %s46, %s48
      %p55 = scmp.eq.s32.totalorder %s17, 1
      %p56 = por %p54, %p55
      %p57 = scmp.ne.s32.totalorder %s48, %s49
      %p58 = scmp.eq.s32.totalorder %s17, 0
      %p59 = por %p57, %p58
      %p60 = scmp.ne.s32.totalorder %s48, %s49
      %p61 = scmp.eq.s32.totalorder %s18, 1
      %p62 = por %p60, %p61
      %p64 = scmp.ne.s32.totalorder %s49, %s63
      %p65 = scmp.eq.s32.totalorder %s18, 0
      %p66 = por %p64, %p65
      %s68 = sadd.s32 %s67, 1
      %p71 = scmp.eq.s32.totalorder %s12, 1
      %p72 = scmp.ne.s32.totalorder %s67, %s69
      %p73 = scmp.eq.s32.totalorder %s12, 0
      %p74 = por %p72, %p73
      %p75 = scmp.ne.s32.totalorder %s67, %s69
      %p76 = scmp.eq.s32.totalorder %s17, 1
      %p77 = por %p75, %p76
      %p78 = scmp.ne.s32.totalorder %s69, %s70
      %p79 = scmp.eq.s32.totalorder %s17, 0
      %p80 = por %p78, %p79
      %p81 = scmp.ne.s32.totalorder %s69, %s70
      %p82 = scmp.eq.s32.totalorder %s18, 1
      %p83 = por %p81, %p82
      %p85 = scmp.ne.s32.totalorder %s70, %s84
      %p86 = scmp.eq.s32.totalorder %s18, 0
      %p87 = por %p85, %p86
      %s89 = sadd.s32 %s88, 1
      %p92 = scmp.eq.s32.totalorder %s12, 1
      %p93 = scmp.ne.s32.totalorder %s88, %s90
      %p94 = scmp.eq.s32.totalorder %s12, 0
      %p95 = por %p93, %p94
      %p96 = scmp.ne.s32.totalorder %s88, %s90
      %p97 = scmp.eq.s32.totalorder %s17, 1
      %p98 = por %p96, %p97
      %p99 = scmp.ne.s32.totalorder %s90, %s91
      %p100 = scmp.eq.s32.totalorder %s17, 0
      %p101 = por %p99, %p100
      %p102 = scmp.ne.s32.totalorder %s90, %s91
      %p103 = scmp.eq.s32.totalorder %s18, 1
      %p104 = por %p102, %p103
      %p106 = scmp.ne.s32.totalorder %s91, %s105
      %p107 = scmp.eq.s32.totalorder %s18, 0
      %p108 = por %p106, %p107
      %s110 = sadd.s32 %s109, 1
      %p113 = scmp.eq.s32.totalorder %s12, 1
      %p114 = scmp.ne.s32.totalorder %s109, %s111
      %p115 = scmp.eq.s32.totalorder %s12, 0
      %p116 = por %p114, %p115
      %p117 = scmp.ne.s32.totalorder %s109, %s111
      %p118 = scmp.eq.s32.totalorder %s17, 1
      %p119 = por %p117, %p118
      %p120 = scmp.ne.s32.totalorder %s111, %s112
      %p121 = scmp.eq.s32.totalorder %s17, 0
      %p122 = por %p120, %p121
      %p123 = scmp.ne.s32.totalorder %s111, %s112
      %p124 = scmp.eq.s32.totalorder %s18, 1
      %p125 = por %p123, %p124
      %p127 = scmp.ne.s32.totalorder %s112, %s126
      %p128 = scmp.eq.s32.totalorder %s18, 0
      %p129 = por %p127, %p128
      %s131 = sadd.s32 %s130, 1
      %p134 = scmp.eq.s32.totalorder %s12, 1
      %p135 = scmp.ne.s32.totalorder %s130, %s132
      %p136 = scmp.eq.s32.totalorder %s12, 0
      %p137 = por %p135, %p136
      %p138 = scmp.ne.s32.totalorder %s130, %s132
      %p139 = scmp.eq.s32.totalorder %s17, 1
      %p140 = por %p138, %p139
      %p141 = scmp.ne.s32.totalorder %s132, %s133
      %p142 = scmp.eq.s32.totalorder %s17, 0
      %p143 = por %p141, %p142
      %p144 = scmp.ne.s32.totalorder %s132, %s133
      %p145 = scmp.eq.s32.totalorder %s18, 1
      %p146 = por %p144, %p145
      %p148 = scmp.ne.s32.totalorder %s133, %s147
      %p149 = scmp.eq.s32.totalorder %s18, 0
      %p150 = por %p148, %p149
      %p151 = scmp.le.s32.totalorder 1, %s12
      %p152 = scmp.lt.s32.totalorder %s12, 3
      %p153 = pnand %p151, %p152
      %p154 = pneg %p153
      // Predicated region
      $region9: #{vit_block.4} parent=5 // pred_check
        _
      $region10: #{vit_block.4} parent=5 // pred_check_branch
        %156 = sbr.rel (%p153) target = $region12
      $region11: #{vit_block.4} parent=5 // pred_region
        %s157 = ssub.s32 %s12, 1
        // Predicated region
        $region13: #{vit_block.4} parent=11 // pred_check
          %p158 = pneg %p59
        $region14: #{vit_block.4} parent=11 // pred_check_branch
          %160 = sbr.rel (%p158) target = $region16
        $region15: #{vit_block.4} parent=11 // pred_region
          _
        $region16: #{vit_block.4} parent=11 // pred_fallthru
          _
        // Predicated region
        $region17: #{vit_block.4} parent=11 // pred_check
          %p161 = pneg %p80
        $region18: #{vit_block.4} parent=11 // pred_check_branch
          %163 = sbr.rel (%p161) target = $region20
        $region19: #{vit_block.4} parent=11 // pred_region
          _
        $region20: #{vit_block.4} parent=11 // pred_fallthru
          _
        // Predicated region
        $region21: #{vit_block.4} parent=11 // pred_check
          %p164 = pneg %p101
        $region22: #{vit_block.4} parent=11 // pred_check_branch
          %166 = sbr.rel (%p164) target = $region24
        $region23: #{vit_block.4} parent=11 // pred_region
          _
        $region24: #{vit_block.4} parent=11 // pred_fallthru
          _
        // Predicated region
        $region25: #{vit_block.4} parent=11 // pred_check
          %p167 = pneg %p122
        $region26: #{vit_block.4} parent=11 // pred_check_branch
          %169 = sbr.rel (%p167) target = $region28
        $region27: #{vit_block.4} parent=11 // pred_region
          _
        $region28: #{vit_block.4} parent=11 // pred_fallthru
          _
      $region12: #{vit_block.4} parent=5 // pred_fallthru
        _
      %p170 = scmp.lt.s32.totalorder %s12, 2
      // Predicated region
      $region29: #{vit_block.4} parent=5 // pred_check
        %p171 = pneg %p170
      $region30: #{vit_block.4} parent=5 // pred_check_branch
        %173 = sbr.rel (%p171) target = $region32
      $region31: #{vit_block.4} parent=5 // pred_region
        // Predicated region
        $region33: #{vit_block.4} parent=31 // pred_check
          %p174 = pneg %p32
        $region34: #{vit_block.4} parent=31 // pred_check_branch
          %176 = sbr.rel (%p174) target = $region36
        $region35: #{vit_block.4} parent=31 // pred_region
          %p177 = scmp.lt.s32.totalorder %s12, 1
          %s178 = scalar_select %p177, %s12, 1
          %s179 = smul.addr %s178, 4
          %s180 = smul.addr %s179, 8
          %s181 = scalar_lea.vmem %s0, %s180
        $region36: #{vit_block.4} parent=31 // pred_fallthru
          _
      $region32: #{vit_block.4} parent=5 // pred_fallthru
        _
      %p182 = scmp.le.s32.totalorder 1, %s12
      %p183 = scmp.lt.s32.totalorder %s12, 3
      %p184 = pnand %p182, %p183
      %p185 = pneg %p184
      // Predicated region
      $region37: #{vit_block.4} parent=5 // pred_check
        _
      $region38: #{vit_block.4} parent=5 // pred_check_branch
        %187 = sbr.rel (%p184) target = $region40
      $region39: #{vit_block.4} parent=5 // pred_region
        %s188 = ssub.s32 %s12, 1
        %p189 = scmp.lt.s32.totalorder %s17, 1
        %s190 = scalar_select %p189, %s17, 1
        %s191 = smul.addr %s190, 4
        %s192 = smul.addr %s191, 8
        %s193 = scalar_lea.vmem %s0, %s192
        %p194 = pneg %p38
        %p195 = pneg %p35
        %p196 = pneg %p59
        %p197 = pneg %p56
        %p198 = pneg %p80
        %p199 = pneg %p77
        %p200 = pneg %p101
        %p201 = pneg %p98
        %p202 = pneg %p122
        %p203 = pneg %p119
        %p204 = pneg %p143
        %p205 = pneg %p140
        %p206 = scmp.lt.s32.totalorder %s17, 1
        %s207 = scalar_select %p206, %s17, 1
        %s208 = smul.addr %s207, 4
        %s209 = smul.addr %s208, 8
        %s210 = scalar_lea.vmem %s0, %s209
        %p212 = scmp.eq.s32.totalorder %s17, 0
        // Predicated region
        $region41: #{vit_block.4} parent=39 // pred_check
          %p213 = pneg %p212
        $region42: #{vit_block.4} parent=39 // pred_check_branch
          %215 = sbr.rel (%p213) target = $region44
        $region43: #{vit_block.4} parent=39 // pred_region
          %s216 = scalar_lea.smem [#allocation2], 0
          %217 = sst [smem:[%s216]] 0.0
          %s218 = scalar_lea.smem [#allocation2], 1
          %219 = sst [smem:[%s218]] 0.0
        $region44: #{vit_block.4} parent=39 // pred_fallthru
          _
        %v220 = vld [vmem:[%s210] sm:$0xff]
        %v221 = vld [vmem:[%s210 + $0x8] sm:$0xff]
        %v222 = vld [vmem:[%s210 + $0x10] sm:$0xff]
        %v223 = vld [vmem:[%s210 + $0x18] sm:$0xff]
        %vm224 = vcmask 64512
        %v225 = vsel %vm224, %v220, 0.0
        %v226 = vsel %vm224, %v221, 0.0
        %v227 = vadd.f32 %v225, %v226
        %v228 = vsel %vm224, %v222, 0.0
        %v229 = vadd.f32 %v227, %v228
        %v230 = vsel %vm224, %v223, 0.0
        %v231 = vadd.f32 %v229, %v230
        %v232 = vrot.slane %v231, 4
        %v233 = vadd.f32 %v231, %v232
        %v234 = vrot.slane %v233, 2
        %v235 = vadd.f32 %v233, %v234
        %v236 = vrot.slane %v235, 1
        %v237 = vadd.f32 %v235, %v236
        %v238 = vrcp.pop 32.0
        %v239 = vmul.f32 32.0, %v238
        %v240 = vsub.f32 1.0, %v239
        %v241 = vmul.f32 %v238, %v240
        %v242 = vadd.f32 %v238, %v241
        %vm243 = vweird.f32 %v238
        %v244 = vsel %vm243, %v238, %v242
        %v245 = vmul.f32 %v237, %v244
        %v246 = vsub.f32 %v220, %v245
        %v247 = vsub.f32 %v221, %v245
        %v248 = vsub.f32 %v222, %v245
        %v249 = vsub.f32 %v223, %v245
        %v250 = vmul.f32 %v246, %v246
        %v251 = vmul.f32 %v247, %v247
        %v252 = vmul.f32 %v248, %v248
        %v253 = vmul.f32 %v249, %v249
        %v254 = vsel %vm224, %v250, 0.0
        %v255 = vsel %vm224, %v251, 0.0
        %v256 = vadd.f32 %v254, %v255
        %v257 = vsel %vm224, %v252, 0.0
        %v258 = vadd.f32 %v256, %v257
        %v259 = vsel %vm224, %v253, 0.0
        %v260 = vadd.f32 %v258, %v259
        %v261 = vrot.slane %v260, 4
        %v262 = vadd.f32 %v260, %v261
        %v263 = vrot.slane %v262, 2
        %v264 = vadd.f32 %v262, %v263
        %v265 = vrot.slane %v264, 1
        %v266 = vadd.f32 %v264, %v265
        %v267 = vmul.f32 %v266, %v244
        %v268 = vadd.f32 %v267, 1e-05
        %v269 = vrsqrt.pop %v268
        %v270 = vmul.f32 %v269, %v268
        %v271 = vmul.f32 %v270, %v269
        %v272 = vmul.f32 0.5, %v271
        %v273 = vsub.f32 1.5, %v272
        %v274 = vmul.f32 %v269, %v273
        %vm275 = vweird.f32 %v268
        %vm276 = vweird.f32 %v269
        %vm277 = vmor %vm275, %vm276
        %v278 = vsel %vm277, %v269, %v274
        %v279 = vmul.f32 %v246, %v278
        %v280 = vmul.f32 %v247, %v278
        %v281 = vmul.f32 %v248, %v278
        %v282 = vmul.f32 %v249, %v278
        %v283 = vld [vmem:[%s1] sm:$0xff]
        %v284 = vld [vmem:[%s1 + $0x8] sm:$0xff]
        %v285 = vld [vmem:[%s1 + $0x10] sm:$0xff]
        %v286 = vld [vmem:[%s1 + $0x18] sm:$0xff]
        %288 = vset.pattern.permute.xlu0 0
        %289 = vperm.xlu0 %288, %v283
        %v290 = vpop.permute.xlu0 %289
        %293 = vset.pattern.permute.xlu0 0
        %294 = vperm.xlu0 %293, %v284
        %v295 = vpop.permute.xlu0 %294
        %298 = vset.pattern.permute.xlu0 0
        %299 = vperm.xlu0 %298, %v285
        %v300 = vpop.permute.xlu0 %299
        %303 = vset.pattern.permute.xlu0 0
        %304 = vperm.xlu0 %303, %v286
        %v305 = vpop.permute.xlu0 %304
        %v307 = vmul.f32 %v279, %v290
        %v308 = vmul.f32 %v280, %v295
        %v309 = vmul.f32 %v281, %v300
        %v310 = vmul.f32 %v282, %v305
        %v311 = vld [vmem:[%s2] sm:$0xff]
        %v312 = vld [vmem:[%s2 + $0x8] sm:$0xff]
        %v313 = vld [vmem:[%s2 + $0x10] sm:$0xff]
        %v314 = vld [vmem:[%s2 + $0x18] sm:$0xff]
        %316 = vset.pattern.permute.xlu0 0
        %317 = vperm.xlu0 %316, %v311
        %v318 = vpop.permute.xlu0 %317
        %321 = vset.pattern.permute.xlu0 0
        %322 = vperm.xlu0 %321, %v312
        %v323 = vpop.permute.xlu0 %322
        %326 = vset.pattern.permute.xlu0 0
        %327 = vperm.xlu0 %326, %v313
        %v328 = vpop.permute.xlu0 %327
        %331 = vset.pattern.permute.xlu0 0
        %332 = vperm.xlu0 %331, %v314
        %v333 = vpop.permute.xlu0 %332
        %v335 = vadd.f32 %v307, %v318
        %v336 = vadd.f32 %v308, %v323
        %v337 = vadd.f32 %v309, %v328
        %v338 = vadd.f32 %v310, %v333
        %v339 = vld [vmem:[%s3] sm:$0xf]
        %v340 = vld [vmem:[%s3 + $0x4] sm:$0xf]
        %v341 = vld [vmem:[%s3 + $0x8] sm:$0xf]
        %v342 = vld [vmem:[%s3 + $0xc] sm:$0xf]
        %v343 = vld [vmem:[%s3 + $0x10] sm:$0xf]
        %v344 = vld [vmem:[%s3 + $0x14] sm:$0xf]
        %v345 = vld [vmem:[%s3 + $0x18] sm:$0xf]
        %v346 = vld [vmem:[%s3 + $0x1c] sm:$0xf]
        %v347 = vpack.c.bf16 %v336, %v335
        %v348 = vpack.c.bf16 %v338, %v337
        %v349 = vld [vmem:[%s4] sm:$0xff]
        %v350 = vld [vmem:[%s4 + $0x8] sm:$0xff]
        %v351 = vld [vmem:[%s4 + $0x10] sm:$0xff]
        %v352 = vld [vmem:[%s4 + $0x18] sm:$0xff]
        %v353 = vld [vmem:[%s4 + $0x20] sm:$0xff]
        %v354 = vld [vmem:[%s4 + $0x28] sm:$0xff]
        %v355 = vld [vmem:[%s4 + $0x30] sm:$0xff]
        %v356 = vld [vmem:[%s4 + $0x38] sm:$0xff]
        %358 = vset.pattern.permute.xlu0 0
        %359 = vperm.xlu0 %358, %v349
        %v360 = vpop.permute.xlu0 %359
        %363 = vset.pattern.permute.xlu0 0
        %364 = vperm.xlu0 %363, %v350
        %v365 = vpop.permute.xlu0 %364
        %368 = vset.pattern.permute.xlu0 0
        %369 = vperm.xlu0 %368, %v351
        %v370 = vpop.permute.xlu0 %369
        %373 = vset.pattern.permute.xlu0 0
        %374 = vperm.xlu0 %373, %v352
        %v375 = vpop.permute.xlu0 %374
        %378 = vset.pattern.permute.xlu0 0
        %379 = vperm.xlu0 %378, %v353
        %v380 = vpop.permute.xlu0 %379
        %383 = vset.pattern.permute.xlu0 0
        %384 = vperm.xlu0 %383, %v354
        %v385 = vpop.permute.xlu0 %384
        %388 = vset.pattern.permute.xlu0 0
        %389 = vperm.xlu0 %388, %v355
        %v390 = vpop.permute.xlu0 %389
        %393 = vset.pattern.permute.xlu0 0
        %394 = vperm.xlu0 %393, %v356
        %v395 = vpop.permute.xlu0 %394
        %v405 = vunpack.c.l.b16 %v339
        %v406 = vunpack.c.l.b16 %v340
        %v407 = vunpack.c.l.b16 %v341
        %v408 = vunpack.c.l.b16 %v342
        %v409 = vunpack.c.l.b16 %v343
        %v410 = vunpack.c.l.b16 %v344
        %v411 = vunpack.c.l.b16 %v345
        %v412 = vunpack.c.l.b16 %v346
        %v413 = vpack.c.b16 %v406, %v405
        %v414 = vpack.c.b16 %v408, %v407
        %v415 = vpack.c.b16 %v410, %v409
        %v416 = vpack.c.b16 %v412, %v411
        %vm417 = vcmask 261120
        %v419 = vsel %vm417, %v413, 0
        %v422 = vsel %vm417, %v414, 0
        %v425 = vsel %vm417, %v415, 0
        %v428 = vsel %vm417, %v416, 0
        %430 = vmatpush.bf16.msra.mxu0 0
        %431 = vmatpush.bf16.msra.mxu0 0
        %432 = vmatpush.bf16.msra.mxu0 0
        %433 = vmatpush.bf16.msra.mxu0 0
        %434 = vmatpush.bf16.msra.mxu0 0
        %435 = vmatpush.bf16.msra.mxu0 0
        %436 = vmatpush.bf16.msra.mxu0 %v348
        %437 = vmatpush.bf16.msra.mxu0 %v347
        %438 = vmatmul.bf16.gmra.mxu0 %v419
        %v439 = vpop.f32.mrf.mxu0
        %v440 = vadd.f32 %v360, %v439
        %v441 = vpop.f32.mrf.mxu0
        %v442 = vadd.f32 %v365, %v441
        %443 = vmatmul.bf16.gmra.mxu0 %v422
        %v444 = vpop.f32.mrf.mxu0
        %v445 = vadd.f32 %v370, %v444
        %v446 = vpop.f32.mrf.mxu0
        %v447 = vadd.f32 %v375, %v446
        %448 = vmatmul.bf16.gmra.mxu0 %v425
        %v449 = vpop.f32.mrf.mxu0
        %v450 = vadd.f32 %v380, %v449
        %v451 = vpop.f32.mrf.mxu0
        %v452 = vadd.f32 %v385, %v451
        %453 = vmatmul.bf16.gmra.mxu0 %v428
        %v454 = vpop.f32.mrf.mxu0
        %v455 = vadd.f32 %v390, %v454
        %v456 = vpop.f32.mrf.mxu0
        %v457 = vadd.f32 %v395, %v456
        %458 = vdwg.mxu0
        %s459 = sld [smem:[#allocation2]]
        %v460 = vsel %vm224, %v440, 0.0
        %v461 = vsel %vm224, %v442, 0.0
        %v462 = vadd.f32 %v460, %v461
        %v463 = vsel %vm224, %v445, 0.0
        %v464 = vadd.f32 %v462, %v463
        %v465 = vsel %vm224, %v447, 0.0
        %v466 = vadd.f32 %v464, %v465
        %v467 = vsel %vm224, %v450, 0.0
        %v468 = vadd.f32 %v466, %v467
        %v469 = vsel %vm224, %v452, 0.0
        %v470 = vadd.f32 %v468, %v469
        %v471 = vsel %vm224, %v455, 0.0
        %v472 = vadd.f32 %v470, %v471
        %v473 = vsel %vm224, %v457, 0.0
        %v474 = vadd.f32 %v472, %v473
        %475 = vadd.xlane.f32.xlu0 %v474
        %v476 = vpop.xlane.xlu0 %475
        %v477 = vrot.slane %v476, 4
        %v478 = vadd.f32 %v476, %v477
        %v479 = vrot.slane %v478, 2
        %v480 = vadd.f32 %v478, %v479
        %v481 = vrot.slane %v480, 1
        %v482 = vadd.f32 %v480, %v481
        %s483 = vtos %v482
        %s484 = sadd.f32 %s459, %s483
        %s485 = scalar_lea.smem [#allocation2], 0
        %486 = sst [smem:[%s485]] %s484
        %s487 = sld [smem:[#allocation2 + $0x1]]
        %v488 = vmul.f32 %v440, %v440
        %v489 = vmul.f32 %v442, %v442
        %v490 = vmul.f32 %v445, %v445
        %v491 = vmul.f32 %v447, %v447
        %v492 = vmul.f32 %v450, %v450
        %v493 = vmul.f32 %v452, %v452
        %v494 = vmul.f32 %v455, %v455
        %v495 = vmul.f32 %v457, %v457
        %v496 = vsel %vm224, %v488, 0.0
        %v497 = vsel %vm224, %v489, 0.0
        %v498 = vadd.f32 %v496, %v497
        %v499 = vsel %vm224, %v490, 0.0
        %v500 = vadd.f32 %v498, %v499
        %v501 = vsel %vm224, %v491, 0.0
        %v502 = vadd.f32 %v500, %v501
        %v503 = vsel %vm224, %v492, 0.0
        %v504 = vadd.f32 %v502, %v503
        %v505 = vsel %vm224, %v493, 0.0
        %v506 = vadd.f32 %v504, %v505
        %v507 = vsel %vm224, %v494, 0.0
        %v508 = vadd.f32 %v506, %v507
        %v509 = vsel %vm224, %v495, 0.0
        %v510 = vadd.f32 %v508, %v509
        %511 = vadd.xlane.f32.xlu0 %v510
        %v512 = vpop.xlane.xlu0 %511
        %v513 = vrot.slane %v512, 4
        %v514 = vadd.f32 %v512, %v513
        %v515 = vrot.slane %v514, 2
        %v516 = vadd.f32 %v514, %v515
        %v517 = vrot.slane %v516, 1
        %v518 = vadd.f32 %v516, %v517
        %s519 = vtos %v518
        %s520 = sadd.f32 %s487, %s519
        %s521 = scalar_lea.smem [#allocation2], 1
        %522 = sst [smem:[%s521]] %s520
        // Predicated region
        $region45: #{vit_block.4} parent=39 // pred_check
          %p523 = pneg %p140
        $region46: #{vit_block.4} parent=39 // pred_check_branch
          %525 = sbr.rel (%p523) target = $region48
        $region47: #{vit_block.4} parent=39 // pred_region
          %527 = vsyncadd [#allocation3], 0
          %s529 = sshll.u32 %s5, 4
          %s530 = int_to_ptr.vmem [resolvable:$true] %s529
          %532 = dma.smem_to_vmem [#allocation2], 16, %s530, [#allocation3]
        $region48: #{vit_block.4} parent=39 // pred_fallthru
          _
        // Predicated region
        $region49: #{vit_block.4} parent=39 // pred_check
          %p533 = pneg %p140
        $region50: #{vit_block.4} parent=39 // pred_check_branch
          %535 = sbr.rel (%p533) target = $region52
        $region51: #{vit_block.4} parent=39 // pred_region
          %537 = dma.done [#allocation3], 16
        $region52: #{vit_block.4} parent=39 // pred_fallthru
          _
        %538 = sfence
      $region40: #{vit_block.4} parent=5 // pred_fallthru
        _
      %p539 = scmp.le.s32.totalorder 2, %s12
      // Predicated region
      $region53: #{vit_block.4} parent=5 // pred_check
        %p540 = pneg %p539
      $region54: #{vit_block.4} parent=5 // pred_check_branch
        %542 = sbr.rel (%p540) target = $region56
      $region55: #{vit_block.4} parent=5 // pred_region
        %s543 = ssub.s32 %s12, 2
      $region56: #{vit_block.4} parent=5 // pred_fallthru
        _
    $region6: #{vit_block.4} parent=1 // loop_footer
      %s16 = sadd.s32 1, %s12
    $region7: #{vit_block.4} parent=1 // loop_footer_branch
      %11 = sbr.rel target = $region3
    $region8: #{vit_block.4} parent=1 // loop_exit
      _
    %544 = vsyncpa [#allocation3], 1
    %s545 = scalar_lea.sflag [#allocation3], 1
    %546 = vsyncpa %s545, 1

// kernel: vit_block.5
$region0: #{vit_block.5}
  #allocation0 [shape = 'u32[]', space=smem, size = 0x4, offset = 0x4, fixed_abs, tag = 'smem constant byte address 0x4 - core index']
  #allocation1 [shape = 'u32[72,128]{1,0:T(1,128)}', space=vmem, size = 0x9000, scoped, tag = 'internal scratch']
  %s0 = inlined_call_operand.vmem [shape: f32[2], index: 0, kind: input, shape index: {}]
  %s1 = inlined_call_operand.vmem [shape: f32[2,32,8], index: 1, kind: input, shape index: {}, may-alias: {1,9}]
  %s2 = inlined_call_operand.vmem [shape: f32[32,1], index: 2, kind: input, shape index: {}]
  %s3 = inlined_call_operand.vmem [shape: f32[32,1], index: 3, kind: input, shape index: {}]
  %s4 = inlined_call_operand.vmem [shape: bf16[64,32], index: 4, kind: input, shape index: {}]
  %s5 = inlined_call_operand.vmem [shape: f32[64,1], index: 5, kind: input, shape index: {}]
  %s6 = inlined_call_operand.vmem [shape: bf16[32,64], index: 6, kind: input, shape index: {}]
  %s7 = inlined_call_operand.vmem [shape: f32[32,1], index: 7, kind: input, shape index: {}]
  %s8 = inlined_call_operand.vmem [shape: f32[6], index: 8, kind: input, shape index: {}]
  %s9 = inlined_call_operand.vmem [shape: f32[2,32,8], index: 9, kind: output, shape index: {}, may-alias: {1,9}]
  %s10 = sld [smem:[#allocation0]]
  $region77: #{vit_block.5} parent=0
    _
  %s12 = ssub.s32 1, %s10
  %s13 = scalar_select 0, %s12, %s10
  $region1: #{vit_block.5} parent=0
    #allocation2 [shape = 'u8[512]{0}', space=smem, size = 0x200, scoped, tag = 'input window, operand 0, single buffered']
    #allocation3 [shape = 's32[2]{0}', space=sflag, size = 0x8, scoped, tag = 'scoped memory for vit_block.5']
    #allocation4 [shape = 'u8[512]{0}', space=smem, size = 0x200, scoped, tag = 'input window, operand 8, single buffered']
    #allocation5 [shape = 's32[1]{0}', space=sflag, size = 0x4, scoped, tag = 'scoped memory for vit_block.5']
    %14 = vsyncpa [#allocation3], 0
    %15 = vsyncpa [#allocation5], 0
    loop: start=0, step=1, limit=4
    $region2: #{vit_block.5} parent=1 // loop_pre_header
      _
    $region3: #{vit_block.5} parent=1 // loop_header
      %s17 = sphi 0, %s21
      %p18 = scmp.ge.s32.totalorder %s17, 4
      %s25 = sphi 0, %s25
      %s27 = sphi 0, %s25
      %s28 = sphi 0, %s27
      %s42 = sphi 0, %s28
      %s48 = sphi 0, %s50
      %s51 = sphi 0, %s48
      %s52 = sphi 0, %s51
      %s68 = sphi 0, %s52
      %s72 = sphi 0, %s72
      %s74 = sphi 0, %s72
      %s75 = sphi 0, %s74
      %s89 = sphi 0, %s75
      %s93 = sphi 0, %s93
      %s95 = sphi 0, %s93
      %s96 = sphi 0, %s95
      %s110 = sphi 0, %s96
      %s114 = sphi 0, %s114
      %s116 = sphi 0, %s114
      %s117 = sphi 0, %s116
      %s131 = sphi 0, %s117
      %s135 = sphi 0, %s135
      %s137 = sphi 0, %s135
      %s138 = sphi 0, %s137
      %s152 = sphi 0, %s138
      %s156 = sphi 0, %s156
      %s158 = sphi 0, %s156
      %s159 = sphi 0, %s158
      %s173 = sphi 0, %s159
      %s177 = sphi 0, %s177
      %s179 = sphi 0, %s177
      %s180 = sphi 0, %s179
      %s194 = sphi 0, %s180
      %s198 = sphi 0, %s198
      %s200 = sphi 0, %s198
      %s201 = sphi 0, %s200
      %s215 = sphi 0, %s201
      %s221 = sphi 0, %s223
      %s224 = sphi 0, %s221
      %s225 = sphi 0, %s224
      %s241 = sphi 0, %s225
    $region4: #{vit_block.5} parent=1 // loop_header_branch
      %20 = sbr.rel (%p18) target = $region8
    $region5: #{vit_block.5} parent=1 // loop_body
      %s22 = ssub.s32 %s17, 1
      %s23 = ssub.s32 %s17, 2
      %s24 = sadd.s32 %s17, 1
      %s26 = sadd.s32 %s25, 1
      %p29 = scmp.eq.s32.totalorder %s17, 1
      %p30 = scmp.ne.s32.totalorder %s25, %s27
      %p31 = scmp.eq.s32.totalorder %s17, 0
      %p32 = por %p30, %p31
      %p33 = scmp.ne.s32.totalorder %s25, %s27
      %p34 = scmp.eq.s32.totalorder %s22, 1
      %p35 = por %p33, %p34
      %p36 = scmp.ne.s32.totalorder %s27, %s28
      %p37 = scmp.eq.s32.totalorder %s22, 0
      %p38 = por %p36, %p37
      %p39 = scmp.ne.s32.totalorder %s27, %s28
      %p40 = scmp.eq.s32.totalorder %s23, 1
      %p41 = por %p39, %p40
      %p43 = scmp.ne.s32.totalorder %s28, %s42
      %p44 = scmp.eq.s32.totalorder %s23, 0
      %p45 = por %p43, %p44
      %s46 = ssub.s32 %s17, %s24
      %p47 = scmp.eq.s32.totalorder %s46, 0
      %s49 = sadd.s32 %s48, 1
      %s50 = scalar_select %p47, %s48, %s49
      %p53 = pneg %p47
      %p54 = scmp.eq.s32.totalorder %s17, 1
      %p55 = por %p53, %p54
      %p56 = scmp.ne.s32.totalorder %s48, %s51
      %p57 = scmp.eq.s32.totalorder %s17, 0
      %p58 = por %p56, %p57
      %p59 = scmp.ne.s32.totalorder %s48, %s51
      %p60 = scmp.eq.s32.totalorder %s22, 1
      %p61 = por %p59, %p60
      %p62 = scmp.ne.s32.totalorder %s51, %s52
      %p63 = scmp.eq.s32.totalorder %s22, 0
      %p64 = por %p62, %p63
      %p65 = scmp.ne.s32.totalorder %s51, %s52
      %p66 = scmp.eq.s32.totalorder %s23, 1
      %p67 = por %p65, %p66
      %p69 = scmp.ne.s32.totalorder %s52, %s68
      %p70 = scmp.eq.s32.totalorder %s23, 0
      %p71 = por %p69, %p70
      %s73 = sadd.s32 %s72, 1
      %p76 = scmp.eq.s32.totalorder %s17, 1
      %p77 = scmp.ne.s32.totalorder %s72, %s74
      %p78 = scmp.eq.s32.totalorder %s17, 0
      %p79 = por %p77, %p78
      %p80 = scmp.ne.s32.totalorder %s72, %s74
      %p81 = scmp.eq.s32.totalorder %s22, 1
      %p82 = por %p80, %p81
      %p83 = scmp.ne.s32.totalorder %s74, %s75
      %p84 = scmp.eq.s32.totalorder %s22, 0
      %p85 = por %p83, %p84
      %p86 = scmp.ne.s32.totalorder %s74, %s75
      %p87 = scmp.eq.s32.totalorder %s23, 1
      %p88 = por %p86, %p87
      %p90 = scmp.ne.s32.totalorder %s75, %s89
      %p91 = scmp.eq.s32.totalorder %s23, 0
      %p92 = por %p90, %p91
      %s94 = sadd.s32 %s93, 1
      %p97 = scmp.eq.s32.totalorder %s17, 1
      %p98 = scmp.ne.s32.totalorder %s93, %s95
      %p99 = scmp.eq.s32.totalorder %s17, 0
      %p100 = por %p98, %p99
      %p101 = scmp.ne.s32.totalorder %s93, %s95
      %p102 = scmp.eq.s32.totalorder %s22, 1
      %p103 = por %p101, %p102
      %p104 = scmp.ne.s32.totalorder %s95, %s96
      %p105 = scmp.eq.s32.totalorder %s22, 0
      %p106 = por %p104, %p105
      %p107 = scmp.ne.s32.totalorder %s95, %s96
      %p108 = scmp.eq.s32.totalorder %s23, 1
      %p109 = por %p107, %p108
      %p111 = scmp.ne.s32.totalorder %s96, %s110
      %p112 = scmp.eq.s32.totalorder %s23, 0
      %p113 = por %p111, %p112
      %s115 = sadd.s32 %s114, 1
      %p118 = scmp.eq.s32.totalorder %s17, 1
      %p119 = scmp.ne.s32.totalorder %s114, %s116
      %p120 = scmp.eq.s32.totalorder %s17, 0
      %p121 = por %p119, %p120
      %p122 = scmp.ne.s32.totalorder %s114, %s116
      %p123 = scmp.eq.s32.totalorder %s22, 1
      %p124 = por %p122, %p123
      %p125 = scmp.ne.s32.totalorder %s116, %s117
      %p126 = scmp.eq.s32.totalorder %s22, 0
      %p127 = por %p125, %p126
      %p128 = scmp.ne.s32.totalorder %s116, %s117
      %p129 = scmp.eq.s32.totalorder %s23, 1
      %p130 = por %p128, %p129
      %p132 = scmp.ne.s32.totalorder %s117, %s131
      %p133 = scmp.eq.s32.totalorder %s23, 0
      %p134 = por %p132, %p133
      %s136 = sadd.s32 %s135, 1
      %p139 = scmp.eq.s32.totalorder %s17, 1
      %p140 = scmp.ne.s32.totalorder %s135, %s137
      %p141 = scmp.eq.s32.totalorder %s17, 0
      %p142 = por %p140, %p141
      %p143 = scmp.ne.s32.totalorder %s135, %s137
      %p144 = scmp.eq.s32.totalorder %s22, 1
      %p145 = por %p143, %p144
      %p146 = scmp.ne.s32.totalorder %s137, %s138
      %p147 = scmp.eq.s32.totalorder %s22, 0
      %p148 = por %p146, %p147
      %p149 = scmp.ne.s32.totalorder %s137, %s138
      %p150 = scmp.eq.s32.totalorder %s23, 1
      %p151 = por %p149, %p150
      %p153 = scmp.ne.s32.totalorder %s138, %s152
      %p154 = scmp.eq.s32.totalorder %s23, 0
      %p155 = por %p153, %p154
      %s157 = sadd.s32 %s156, 1
      %p160 = scmp.eq.s32.totalorder %s17, 1
      %p161 = scmp.ne.s32.totalorder %s156, %s158
      %p162 = scmp.eq.s32.totalorder %s17, 0
      %p163 = por %p161, %p162
      %p164 = scmp.ne.s32.totalorder %s156, %s158
      %p165 = scmp.eq.s32.totalorder %s22, 1
      %p166 = por %p164, %p165
      %p167 = scmp.ne.s32.totalorder %s158, %s159
      %p168 = scmp.eq.s32.totalorder %s22, 0
      %p169 = por %p167, %p168
      %p170 = scmp.ne.s32.totalorder %s158, %s159
      %p171 = scmp.eq.s32.totalorder %s23, 1
      %p172 = por %p170, %p171
      %p174 = scmp.ne.s32.totalorder %s159, %s173
      %p175 = scmp.eq.s32.totalorder %s23, 0
      %p176 = por %p174, %p175
      %s178 = sadd.s32 %s177, 1
      %p181 = scmp.eq.s32.totalorder %s17, 1
      %p182 = scmp.ne.s32.totalorder %s177, %s179
      %p183 = scmp.eq.s32.totalorder %s17, 0
      %p184 = por %p182, %p183
      %p185 = scmp.ne.s32.totalorder %s177, %s179
      %p186 = scmp.eq.s32.totalorder %s22, 1
      %p187 = por %p185, %p186
      %p188 = scmp.ne.s32.totalorder %s179, %s180
      %p189 = scmp.eq.s32.totalorder %s22, 0
      %p190 = por %p188, %p189
      %p191 = scmp.ne.s32.totalorder %s179, %s180
      %p192 = scmp.eq.s32.totalorder %s23, 1
      %p193 = por %p191, %p192
      %p195 = scmp.ne.s32.totalorder %s180, %s194
      %p196 = scmp.eq.s32.totalorder %s23, 0
      %p197 = por %p195, %p196
      %s199 = sadd.s32 %s198, 1
      %p202 = scmp.eq.s32.totalorder %s17, 1
      %p203 = scmp.ne.s32.totalorder %s198, %s200
      %p204 = scmp.eq.s32.totalorder %s17, 0
      %p205 = por %p203, %p204
      %p206 = scmp.ne.s32.totalorder %s198, %s200
      %p207 = scmp.eq.s32.totalorder %s22, 1
      %p208 = por %p206, %p207
      %p209 = scmp.ne.s32.totalorder %s200, %s201
      %p210 = scmp.eq.s32.totalorder %s22, 0
      %p211 = por %p209, %p210
      %p212 = scmp.ne.s32.totalorder %s200, %s201
      %p213 = scmp.eq.s32.totalorder %s23, 1
      %p214 = por %p212, %p213
      %p216 = scmp.ne.s32.totalorder %s201, %s215
      %p217 = scmp.eq.s32.totalorder %s23, 0
      %p218 = por %p216, %p217
      %s219 = ssub.s32 %s17, %s24
      %p220 = scmp.eq.s32.totalorder %s219, 0
      %s222 = sadd.s32 %s221, 1
      %s223 = scalar_select %p220, %s221, %s222
      %p226 = pneg %p220
      %p227 = scmp.eq.s32.totalorder %s17, 1
      %p228 = por %p226, %p227
      %p229 = scmp.ne.s32.totalorder %s221, %s224
      %p230 = scmp.eq.s32.totalorder %s17, 0
      %p231 = por %p229, %p230
      %p232 = scmp.ne.s32.totalorder %s221, %s224
      %p233 = scmp.eq.s32.totalorder %s22, 1
      %p234 = por %p232, %p233
      %p235 = scmp.ne.s32.totalorder %s224, %s225
      %p236 = scmp.eq.s32.totalorder %s22, 0
      %p237 = por %p235, %p236
      %p238 = scmp.ne.s32.totalorder %s224, %s225
      %p239 = scmp.eq.s32.totalorder %s23, 1
      %p240 = por %p238, %p239
      %p242 = scmp.ne.s32.totalorder %s225, %s241
      %p243 = scmp.eq.s32.totalorder %s23, 0
      %p244 = por %p242, %p243
      %p245 = scmp.le.s32.totalorder 1, %s17
      %p246 = scmp.lt.s32.totalorder %s17, 3
      %p247 = pnand %p245, %p246
      %p248 = pneg %p247
      // Predicated region
      $region9: #{vit_block.5} parent=5 // pred_check
        _
      $region10: #{vit_block.5} parent=5 // pred_check_branch
        %250 = sbr.rel (%p247) target = $region12
      $region11: #{vit_block.5} parent=5 // pred_region
        %s251 = ssub.s32 %s17, 1
        // Predicated region
        $region13: #{vit_block.5} parent=11 // pred_check
          %p252 = pneg %p38
        $region14: #{vit_block.5} parent=11 // pred_check_branch
          %254 = sbr.rel (%p252) target = $region16
        $region15: #{vit_block.5} parent=11 // pred_region
          %256 = vsyncadd [#allocation3], 0
          %s258 = sshll.u32 %s0, 4
          %s259 = int_to_ptr.vmem [resolvable:$true] %s258
          %261 = dma.vmem_to_smem %s259, 16, [#allocation2], [#allocation3]
        $region16: #{vit_block.5} parent=11 // pred_fallthru
          _
        // Predicated region
        $region17: #{vit_block.5} parent=11 // pred_check
          %p262 = pneg %p85
        $region18: #{vit_block.5} parent=11 // pred_check_branch
          %264 = sbr.rel (%p262) target = $region20
        $region19: #{vit_block.5} parent=11 // pred_region
          _
        $region20: #{vit_block.5} parent=11 // pred_fallthru
          _
        // Predicated region
        $region21: #{vit_block.5} parent=11 // pred_check
          %p265 = pneg %p106
        $region22: #{vit_block.5} parent=11 // pred_check_branch
          %267 = sbr.rel (%p265) target = $region24
        $region23: #{vit_block.5} parent=11 // pred_region
          _
        $region24: #{vit_block.5} parent=11 // pred_fallthru
          _
        // Predicated region
        $region25: #{vit_block.5} parent=11 // pred_check
          %p268 = pneg %p127
        $region26: #{vit_block.5} parent=11 // pred_check_branch
          %270 = sbr.rel (%p268) target = $region28
        $region27: #{vit_block.5} parent=11 // pred_region
          _
        $region28: #{vit_block.5} parent=11 // pred_fallthru
          _
        // Predicated region
        $region29: #{vit_block.5} parent=11 // pred_check
          %p271 = pneg %p148
        $region30: #{vit_block.5} parent=11 // pred_check_branch
          %273 = sbr.rel (%p271) target = $region32
        $region31: #{vit_block.5} parent=11 // pred_region
          _
        $region32: #{vit_block.5} parent=11 // pred_fallthru
          _
        // Predicated region
        $region33: #{vit_block.5} parent=11 // pred_check
          %p274 = pneg %p169
        $region34: #{vit_block.5} parent=11 // pred_check_branch
          %276 = sbr.rel (%p274) target = $region36
        $region35: #{vit_block.5} parent=11 // pred_region
          _
        $region36: #{vit_block.5} parent=11 // pred_fallthru
          _
        // Predicated region
        $region37: #{vit_block.5} parent=11 // pred_check
          %p277 = pneg %p190
        $region38: #{vit_block.5} parent=11 // pred_check_branch
          %279 = sbr.rel (%p277) target = $region40
        $region39: #{vit_block.5} parent=11 // pred_region
          _
        $region40: #{vit_block.5} parent=11 // pred_fallthru
          _
        // Predicated region
        $region41: #{vit_block.5} parent=11 // pred_check
          %p280 = pneg %p211
        $region42: #{vit_block.5} parent=11 // pred_check_branch
          %282 = sbr.rel (%p280) target = $region44
        $region43: #{vit_block.5} parent=11 // pred_region
          %284 = vsyncadd [#allocation5], 0
          %s286 = sshll.u32 %s8, 4
          %s287 = int_to_ptr.vmem [resolvable:$true] %s286
          %289 = dma.vmem_to_smem %s287, 16, [#allocation4], [#allocation5]
        $region44: #{vit_block.5} parent=11 // pred_fallthru
          _
      $region12: #{vit_block.5} parent=5 // pred_fallthru
        _
      %p290 = scmp.lt.s32.totalorder %s17, 2
      // Predicated region
      $region45: #{vit_block.5} parent=5 // pred_check
        %p291 = pneg %p290
      $region46: #{vit_block.5} parent=5 // pred_check_branch
        %293 = sbr.rel (%p291) target = $region48
      $region47: #{vit_block.5} parent=5 // pred_region
        // Predicated region
        $region49: #{vit_block.5} parent=47 // pred_check
          %p294 = pneg %p58
        $region50: #{vit_block.5} parent=47 // pred_check_branch
          %296 = sbr.rel (%p294) target = $region52
        $region51: #{vit_block.5} parent=47 // pred_region
          %p297 = scmp.lt.s32.totalorder %s17, 1
          %s298 = scalar_select %p297, %s17, 1
          %s299 = smul.addr %s298, 4
          %s300 = smul.addr %s299, 8
          %s301 = scalar_lea.vmem %s1, %s300
        $region52: #{vit_block.5} parent=47 // pred_fallthru
          _
      $region48: #{vit_block.5} parent=5 // pred_fallthru
        _
      %p302 = scmp.le.s32.totalorder 1, %s17
      %p303 = scmp.lt.s32.totalorder %s17, 3
      %p304 = pnand %p302, %p303
      %p305 = pneg %p304
      // Predicated region
      $region53: #{vit_block.5} parent=5 // pred_check
        _
      $region54: #{vit_block.5} parent=5 // pred_check_branch
        %307 = sbr.rel (%p304) target = $region56
      $region55: #{vit_block.5} parent=5 // pred_region
        %s308 = ssub.s32 %s17, 1
        // Predicated region
        $region57: #{vit_block.5} parent=55 // pred_check
          %p309 = pneg %p38
        $region58: #{vit_block.5} parent=55 // pred_check_branch
          %311 = sbr.rel (%p309) target = $region60
        $region59: #{vit_block.5} parent=55 // pred_region
          %313 = dma.done [#allocation3], 16
        $region60: #{vit_block.5} parent=55 // pred_fallthru
          _
        // Predicated region
        $region61: #{vit_block.5} parent=55 // pred_check
          %p314 = pneg %p211
        $region62: #{vit_block.5} parent=55 // pred_check_branch
          %316 = sbr.rel (%p314) target = $region64
        $region63: #{vit_block.5} parent=55 // pred_region
          %318 = dma.done [#allocation5], 16
        $region64: #{vit_block.5} parent=55 // pred_fallthru
          _
        %319 = sfence
        %p320 = pneg %p38
        %p321 = pneg %p35
        %p322 = scmp.lt.s32.totalorder %s22, 1
        %s323 = scalar_select %p322, %s22, 1
        %s324 = smul.addr %s323, 4
        %s325 = smul.addr %s324, 8
        %s326 = scalar_lea.vmem %s1, %s325
        %p327 = pneg %p64
        %p328 = pneg %p61
        %p329 = pneg %p85
        %p330 = pneg %p82
        %p331 = pneg %p106
        %p332 = pneg %p103
        %p333 = pneg %p127
        %p334 = pneg %p124
        %p335 = pneg %p148
        %p336 = pneg %p145
        %p337 = pneg %p169
        %p338 = pneg %p166
        %p339 = pneg %p190
        %p340 = pneg %p187
        %p341 = pneg %p211
        %p342 = pneg %p208
        %p343 = pneg %p237
        %p344 = pneg %p234
        %p345 = scmp.lt.s32.totalorder %s22, 1
        %s346 = scalar_select %p345, %s22, 1
        %s347 = smul.addr %s346, 4
        %s348 = smul.addr %s347, 8
        %s349 = scalar_lea.vmem %s9, %s348
        %p350 = scmp.lt.s32.totalorder %s22, 1
        %s351 = scalar_select %p350, %s22, 1
        %s352 = smul.addr %s351, 4
        %s353 = smul.addr %s352, 8
        %s354 = scalar_lea.vmem %s1, %s353
        %p355 = scmp.lt.s32.totalorder %s22, 1
        %s356 = scalar_select %p355, %s22, 1
        %s357 = smul.addr %s356, 4
        %s358 = smul.addr %s357, 8
        %s359 = scalar_lea.vmem %s9, %s358
        %v361 = vld [vmem:[%s354] sm:$0xff]
        %v362 = vld [vmem:[%s354 + $0x8] sm:$0xff]
        %v363 = vld [vmem:[%s354 + $0x10] sm:$0xff]
        %v364 = vld [vmem:[%s354 + $0x18] sm:$0xff]
        %vm365 = vcmask 64512
        %v366 = vsel %vm365, %v361, 0.0
        %v367 = vsel %vm365, %v362, 0.0
        %v368 = vadd.f32 %v366, %v367
        %v369 = vsel %vm365, %v363, 0.0
        %v370 = vadd.f32 %v368, %v369
        %v371 = vsel %vm365, %v364, 0.0
        %v372 = vadd.f32 %v370, %v371
        %v373 = vrot.slane %v372, 4
        %v374 = vadd.f32 %v372, %v373
        %v375 = vrot.slane %v374, 2
        %v376 = vadd.f32 %v374, %v375
        %v377 = vrot.slane %v376, 1
        %v378 = vadd.f32 %v376, %v377
        %v379 = vrcp.pop 32.0
        %v380 = vmul.f32 32.0, %v379
        %v381 = vsub.f32 1.0, %v380
        %v382 = vmul.f32 %v379, %v381
        %v383 = vadd.f32 %v379, %v382
        %vm384 = vweird.f32 %v379
        %v385 = vsel %vm384, %v379, %v383
        %v386 = vmul.f32 %v378, %v385
        %v387 = vsub.f32 %v361, %v386
        %v388 = vsub.f32 %v362, %v386
        %v389 = vsub.f32 %v363, %v386
        %v390 = vsub.f32 %v364, %v386
        %v391 = vmul.f32 %v387, %v387
        %v392 = vmul.f32 %v388, %v388
        %v393 = vmul.f32 %v389, %v389
        %v394 = vmul.f32 %v390, %v390
        %v395 = vsel %vm365, %v391, 0.0
        %v396 = vsel %vm365, %v392, 0.0
        %v397 = vadd.f32 %v395, %v396
        %v398 = vsel %vm365, %v393, 0.0
        %v399 = vadd.f32 %v397, %v398
        %v400 = vsel %vm365, %v394, 0.0
        %v401 = vadd.f32 %v399, %v400
        %v402 = vrot.slane %v401, 4
        %v403 = vadd.f32 %v401, %v402
        %v404 = vrot.slane %v403, 2
        %v405 = vadd.f32 %v403, %v404
        %v406 = vrot.slane %v405, 1
        %v407 = vadd.f32 %v405, %v406
        %v408 = vmul.f32 %v407, %v385
        %v409 = vadd.f32 %v408, 1e-05
        %v410 = vrsqrt.pop %v409
        %v411 = vmul.f32 %v410, %v409
        %v412 = vmul.f32 %v411, %v410
        %v413 = vmul.f32 0.5, %v412
        %v414 = vsub.f32 1.5, %v413
        %v415 = vmul.f32 %v410, %v414
        %vm416 = vweird.f32 %v409
        %vm417 = vweird.f32 %v410
        %vm418 = vmor %vm416, %vm417
        %v419 = vsel %vm418, %v410, %v415
        %v420 = vmul.f32 %v387, %v419
        %v421 = vmul.f32 %v388, %v419
        %v422 = vmul.f32 %v389, %v419
        %v423 = vmul.f32 %v390, %v419
        %v424 = vld [vmem:[%s2] sm:$0xff]
        %v425 = vld [vmem:[%s2 + $0x8] sm:$0xff]
        %v426 = vld [vmem:[%s2 + $0x10] sm:$0xff]
        %v427 = vld [vmem:[%s2 + $0x18] sm:$0xff]
        %429 = vset.pattern.permute.xlu0 0
        %430 = vperm.xlu0 %429, %v424
        %v431 = vpop.permute.xlu0 %430
        %434 = vset.pattern.permute.xlu0 0
        %435 = vperm.xlu0 %434, %v425
        %v436 = vpop.permute.xlu0 %435
        %439 = vset.pattern.permute.xlu0 0
        %440 = vperm.xlu0 %439, %v426
        %v441 = vpop.permute.xlu0 %440
        %444 = vset.pattern.permute.xlu0 0
        %445 = vperm.xlu0 %444, %v427
        %v446 = vpop.permute.xlu0 %445
        %v448 = vmul.f32 %v420, %v431
        %v449 = vmul.f32 %v421, %v436
        %v450 = vmul.f32 %v422, %v441
        %v451 = vmul.f32 %v423, %v446
        %v452 = vld [vmem:[%s3] sm:$0xff]
        %v453 = vld [vmem:[%s3 + $0x8] sm:$0xff]
        %v454 = vld [vmem:[%s3 + $0x10] sm:$0xff]
        %v455 = vld [vmem:[%s3 + $0x18] sm:$0xff]
        %457 = vset.pattern.permute.xlu0 0
        %458 = vperm.xlu0 %457, %v452
        %v459 = vpop.permute.xlu0 %458
        %462 = vset.pattern.permute.xlu0 0
        %463 = vperm.xlu0 %462, %v453
        %v464 = vpop.permute.xlu0 %463
        %467 = vset.pattern.permute.xlu0 0
        %468 = vperm.xlu0 %467, %v454
        %v469 = vpop.permute.xlu0 %468
        %472 = vset.pattern.permute.xlu0 0
        %473 = vperm.xlu0 %472, %v455
        %v474 = vpop.permute.xlu0 %473
        %v476 = vadd.f32 %v448, %v459
        %v477 = vadd.f32 %v449, %v464
        %v478 = vadd.f32 %v450, %v469
        %v479 = vadd.f32 %v451, %v474
        %v480 = vld [vmem:[%s4] sm:$0xf]
        %v481 = vld [vmem:[%s4 + $0x4] sm:$0xf]
        %v482 = vld [vmem:[%s4 + $0x8] sm:$0xf]
        %v483 = vld [vmem:[%s4 + $0xc] sm:$0xf]
        %v484 = vld [vmem:[%s4 + $0x10] sm:$0xf]
        %v485 = vld [vmem:[%s4 + $0x14] sm:$0xf]
        %v486 = vld [vmem:[%s4 + $0x18] sm:$0xf]
        %v487 = vld [vmem:[%s4 + $0x1c] sm:$0xf]
        %v488 = vpack.c.bf16 %v477, %v476
        %v489 = vpack.c.bf16 %v479, %v478
        %v490 = vld [vmem:[%s5] sm:$0xff]
        %v491 = vld [vmem:[%s5 + $0x8] sm:$0xff]
        %v492 = vld [vmem:[%s5 + $0x10] sm:$0xff]
        %v493 = vld [vmem:[%s5 + $0x18] sm:$0xff]
        %v494 = vld [vmem:[%s5 + $0x20] sm:$0xff]
        %v495 = vld [vmem:[%s5 + $0x28] sm:$0xff]
        %v496 = vld [vmem:[%s5 + $0x30] sm:$0xff]
        %v497 = vld [vmem:[%s5 + $0x38] sm:$0xff]
        %499 = vset.pattern.permute.xlu0 0
        %500 = vperm.xlu0 %499, %v490
        %v501 = vpop.permute.xlu0 %500
        %504 = vset.pattern.permute.xlu0 0
        %505 = vperm.xlu0 %504, %v491
        %v506 = vpop.permute.xlu0 %505
        %509 = vset.pattern.permute.xlu0 0
        %510 = vperm.xlu0 %509, %v492
        %v511 = vpop.permute.xlu0 %510
        %514 = vset.pattern.permute.xlu0 0
        %515 = vperm.xlu0 %514, %v493
        %v516 = vpop.permute.xlu0 %515
        %519 = vset.pattern.permute.xlu0 0
        %520 = vperm.xlu0 %519, %v494
        %v521 = vpop.permute.xlu0 %520
        %524 = vset.pattern.permute.xlu0 0
        %525 = vperm.xlu0 %524, %v495
        %v526 = vpop.permute.xlu0 %525
        %529 = vset.pattern.permute.xlu0 0
        %530 = vperm.xlu0 %529, %v496
        %v531 = vpop.permute.xlu0 %530
        %534 = vset.pattern.permute.xlu0 0
        %535 = vperm.xlu0 %534, %v497
        %v536 = vpop.permute.xlu0 %535
        %v546 = vunpack.c.l.b16 %v480
        %v547 = vunpack.c.l.b16 %v481
        %v548 = vunpack.c.l.b16 %v482
        %v549 = vunpack.c.l.b16 %v483
        %v550 = vunpack.c.l.b16 %v484
        %v551 = vunpack.c.l.b16 %v485
        %v552 = vunpack.c.l.b16 %v486
        %v553 = vunpack.c.l.b16 %v487
        %v554 = vpack.c.b16 %v547, %v546
        %v555 = vpack.c.b16 %v549, %v548
        %v556 = vpack.c.b16 %v551, %v550
        %v557 = vpack.c.b16 %v553, %v552
        %vm558 = vcmask 261120
        %v560 = vsel %vm558, %v554, 0
        %v563 = vsel %vm558, %v555, 0
        %v566 = vsel %vm558, %v556, 0
        %v569 = vsel %vm558, %v557, 0
        %571 = vmatpush.bf16.msra.mxu0 0
        %572 = vmatpush.bf16.msra.mxu0 0
        %573 = vmatpush.bf16.msra.mxu0 0
        %574 = vmatpush.bf16.msra.mxu0 0
        %575 = vmatpush.bf16.msra.mxu0 0
        %576 = vmatpush.bf16.msra.mxu0 0
        %577 = vmatpush.bf16.msra.mxu0 %v489
        %578 = vmatpush.bf16.msra.mxu0 %v488
        %579 = vmatmul.bf16.gmra.mxu0 %v560
        %v580 = vpop.f32.mrf.mxu0
        %v581 = vadd.f32 %v501, %v580
        %v582 = vpop.f32.mrf.mxu0
        %v583 = vadd.f32 %v506, %v582
        %584 = vmatmul.bf16.gmra.mxu0 %v563
        %v585 = vpop.f32.mrf.mxu0
        %v586 = vadd.f32 %v511, %v585
        %v587 = vpop.f32.mrf.mxu0
        %v588 = vadd.f32 %v516, %v587
        %589 = vmatmul.bf16.gmra.mxu0 %v566
        %v590 = vpop.f32.mrf.mxu0
        %v591 = vadd.f32 %v521, %v590
        %v592 = vpop.f32.mrf.mxu0
        %v593 = vadd.f32 %v526, %v592
        %594 = vmatmul.bf16.gmra.mxu0 %v569
        %v595 = vpop.f32.mrf.mxu0
        %v596 = vadd.f32 %v531, %v595
        %v597 = vpop.f32.mrf.mxu0
        %v598 = vadd.f32 %v536, %v597
        %599 = vdwg.mxu0
        %s600 = sld [smem:[#allocation2]]
        %s601 = sld [smem:[#allocation2 + $0x1]]
        %v602 = vrcp.pop 1024.0
        %v603 = vmul.f32 1024.0, %v602
        %v604 = vsub.f32 1.0, %v603
        %v605 = vmul.f32 %v602, %v604
        %v606 = vadd.f32 %v602, %v605
        %vm607 = vweird.f32 %v602
        %v608 = vsel %vm607, %v602, %v606
        %s609 = vtos %v608
        %s610 = smul.f32 %s600, %s609
        %s611 = smul.f32 %s600, %s600
        %v612 = vrcp.pop 1024.0
        %v613 = vmul.f32 1024.0, %v612
        %v614 = vsub.f32 1.0, %v613
        %v615 = vmul.f32 %v612, %v614
        %v616 = vadd.f32 %v612, %v615
        %vm617 = vweird.f32 %v612
        %v618 = vsel %vm617, %v612, %v616
        %s619 = vtos %v618
        %s620 = smul.f32 %s611, %s619
        %s621 = ssub.f32 %s601, %s620
        %v622 = vrcp.pop 1023.0
        %v623 = vmul.f32 1023.0, %v622
        %v624 = vsub.f32 1.0, %v623
        %v625 = vmul.f32 %v622, %v624
        %v626 = vadd.f32 %v622, %v625
        %vm627 = vweird.f32 %v622
        %v628 = vsel %vm627, %v622, %v626
        %s629 = vtos %v628
        %s630 = smul.f32 %s621, %s629
        %s631 = smax.f32 %s630, 0.0
        %v632 = vstv %s610
        %v633 = vsub.f32 %v581, %v632
        %v634 = vsub.f32 %v583, %v632
        %v635 = vsub.f32 %v586, %v632
        %v636 = vsub.f32 %v588, %v632
        %v637 = vsub.f32 %v591, %v632
        %v638 = vsub.f32 %v593, %v632
        %v639 = vsub.f32 %v596, %v632
        %v640 = vsub.f32 %v598, %v632
        %v641 = vstv %s631
        %v642 = vrsqrt.pop %v641
        %v643 = vmul.f32 %v642, %v641
        %v644 = vmul.f32 %v643, %v642
        %v645 = vmul.f32 0.5, %v644
        %v646 = vsub.f32 1.5, %v645
        %v647 = vmul.f32 %v642, %v646
        %vm648 = vweird.f32 %v641
        %vm649 = vweird.f32 %v642
        %vm650 = vmor %vm648, %vm649
        %v651 = vsel %vm650, %v642, %v647
        %s652 = vtos %v651
        %v653 = vstv %s652
        %v654 = vmul.f32 %v633, %v653
        %v655 = vmul.f32 %v634, %v653
        %v656 = vmul.f32 %v635, %v653
        %v657 = vmul.f32 %v636, %v653
        %v658 = vmul.f32 %v637, %v653
        %v659 = vmul.f32 %v638, %v653
        %v660 = vmul.f32 %v639, %v653
        %v661 = vmul.f32 %v640, %v653
        %s662 = sld [smem:[#allocation4]]
        %s663 = sld [smem:[#allocation4 + $0x1]]
        %s664 = sld [smem:[#allocation4 + $0x2]]
        %s665 = sld [smem:[#allocation4 + $0x3]]
        %s666 = sld [smem:[#allocation4 + $0x4]]
        %s667 = sld [smem:[#allocation4 + $0x5]]
        %s668 = sadd.f32 %s663, 1.0
        %v669 = vstv %s668
        %v670 = vmul.f32 %v654, %v669
        %v671 = vmul.f32 %v655, %v669
        %v672 = vmul.f32 %v656, %v669
        %v673 = vmul.f32 %v657, %v669
        %v674 = vmul.f32 %v658, %v669
        %v675 = vmul.f32 %v659, %v669
        %v676 = vmul.f32 %v660, %v669
        %v677 = vmul.f32 %v661, %v669
        %v678 = vstv %s662
        %v679 = vadd.f32 %v670, %v678
        %v680 = vadd.f32 %v671, %v678
        %v681 = vadd.f32 %v672, %v678
        %v682 = vadd.f32 %v673, %v678
        %v683 = vadd.f32 %v674, %v678
        %v684 = vadd.f32 %v675, %v678
        %v685 = vadd.f32 %v676, %v678
        %v686 = vadd.f32 %v677, %v678
        %s687 = sadd.f32 %s665, 1.0
        %v688 = vstv %s687
        %v689 = vmul.f32 %v654, %v688
        %v690 = vmul.f32 %v655, %v688
        %v691 = vmul.f32 %v656, %v688
        %v692 = vmul.f32 %v657, %v688
        %v693 = vmul.f32 %v658, %v688
        %v694 = vmul.f32 %v659, %v688
        %v695 = vmul.f32 %v660, %v688
        %v696 = vmul.f32 %v661, %v688
        %v697 = vstv %s664
        %v698 = vadd.f32 %v689, %v697
        %v699 = vadd.f32 %v690, %v697
        %v700 = vadd.f32 %v691, %v697
        %v701 = vadd.f32 %v692, %v697
        %v702 = vadd.f32 %v693, %v697
        %v703 = vadd.f32 %v694, %v697
        %v704 = vadd.f32 %v695, %v697
        %v705 = vadd.f32 %v696, %v697
        %v706 = vxor.u32 %v698, 2147483648
        %v707 = vxor.u32 %v699, 2147483648
        %v708 = vxor.u32 %v700, 2147483648
        %v709 = vxor.u32 %v701, 2147483648
        %v710 = vxor.u32 %v702, 2147483648
        %v711 = vxor.u32 %v703, 2147483648
        %v712 = vxor.u32 %v704, 2147483648
        %v713 = vxor.u32 %v705, 2147483648
        %v714 = vmul.f32 %v706, 1.442695
        %v715 = vpow.pop %v714
        %v716 = vmul.f32 %v707, 1.442695
        %v717 = vpow.pop %v716
        %v718 = vmul.f32 %v708, 1.442695
        %v719 = vpow.pop %v718
        %v720 = vmul.f32 %v709, 1.442695
        %v721 = vpow.pop %v720
        %v722 = vmul.f32 %v710, 1.442695
        %v723 = vpow.pop %v722
        %v724 = vmul.f32 %v711, 1.442695
        %v725 = vpow.pop %v724
        %v726 = vmul.f32 %v712, 1.442695
        %v727 = vpow.pop %v726
        %v728 = vmul.f32 %v713, 1.442695
        %v729 = vpow.pop %v728
        %v730 = vadd.f32 %v715, 1.0
        %v731 = vadd.f32 %v717, 1.0
        %v732 = vadd.f32 %v719, 1.0
        %v733 = vadd.f32 %v721, 1.0
        %v734 = vadd.f32 %v723, 1.0
        %v735 = vadd.f32 %v725, 1.0
        %v736 = vadd.f32 %v727, 1.0
        %v737 = vadd.f32 %v729, 1.0
        %v738 = vrcp.pop %v730
        %v739 = vmul.f32 %v730, %v738
        %v740 = vsub.f32 1.0, %v739
        %v741 = vmul.f32 %v738, %v740
        %v742 = vadd.f32 %v738, %v741
        %vm743 = vweird.f32 %v730
        %vm744 = vweird.f32 %v738
        %vm745 = vmor %vm743, %vm744
        %v746 = vsel %vm745, %v738, %v742
        %v747 = vand.u32 2147483647, %v730
        %vm748 = vcmp.eq.f32.partialorder %v747, 8.507059e+37
        %v749 = vand.u32 %v730, 2147483648
        %v750 = vor.u32 1.1754944e-38, %v749
        %v751 = vsel %vm748, %v750, %v746
        %v752 = vmul.f32 1.0, %v751
        %v753 = vrcp.pop %v731
        %v754 = vmul.f32 %v731, %v753
        %v755 = vsub.f32 1.0, %v754
        %v756 = vmul.f32 %v753, %v755
        %v757 = vadd.f32 %v753, %v756
        %vm758 = vweird.f32 %v731
        %vm759 = vweird.f32 %v753
        %vm760 = vmor %vm758, %vm759
        %v761 = vsel %vm760, %v753, %v757
        %v762 = vand.u32 2147483647, %v731
        %vm763 = vcmp.eq.f32.partialorder %v762, 8.507059e+37
        %v764 = vand.u32 %v731, 2147483648
        %v765 = vor.u32 1.1754944e-38, %v764
        %v766 = vsel %vm763, %v765, %v761
        %v767 = vmul.f32 1.0, %v766
        %v768 = vrcp.pop %v732
        %v769 = vmul.f32 %v732, %v768
        %v770 = vsub.f32 1.0, %v769
        %v771 = vmul.f32 %v768, %v770
        %v772 = vadd.f32 %v768, %v771
        %vm773 = vweird.f32 %v732
        %vm774 = vweird.f32 %v768
        %vm775 = vmor %vm773, %vm774
        %v776 = vsel %vm775, %v768, %v772
        %v777 = vand.u32 2147483647, %v732
        %vm778 = vcmp.eq.f32.partialorder %v777, 8.507059e+37
        %v779 = vand.u32 %v732, 2147483648
        %v780 = vor.u32 1.1754944e-38, %v779
        %v781 = vsel %vm778, %v780, %v776
        %v782 = vmul.f32 1.0, %v781
        %v783 = vrcp.pop %v733
        %v784 = vmul.f32 %v733, %v783
        %v785 = vsub.f32 1.0, %v784
        %v786 = vmul.f32 %v783, %v785
        %v787 = vadd.f32 %v783, %v786
        %vm788 = vweird.f32 %v733
        %vm789 = vweird.f32 %v783
        %vm790 = vmor %vm788, %vm789
        %v791 = vsel %vm790, %v783, %v787
        %v792 = vand.u32 2147483647, %v733
        %vm793 = vcmp.eq.f32.partialorder %v792, 8.507059e+37
        %v794 = vand.u32 %v733, 2147483648
        %v795 = vor.u32 1.1754944e-38, %v794
        %v796 = vsel %vm793, %v795, %v791
        %v797 = vmul.f32 1.0, %v796
        %v798 = vrcp.pop %v734
        %v799 = vmul.f32 %v734, %v798
        %v800 = vsub.f32 1.0, %v799
        %v801 = vmul.f32 %v798, %v800
        %v802 = vadd.f32 %v798, %v801
        %vm803 = vweird.f32 %v734
        %vm804 = vweird.f32 %v798
        %vm805 = vmor %vm803, %vm804
        %v806 = vsel %vm805, %v798, %v802
        %v807 = vand.u32 2147483647, %v734
        %vm808 = vcmp.eq.f32.partialorder %v807, 8.507059e+37
        %v809 = vand.u32 %v734, 2147483648
        %v810 = vor.u32 1.1754944e-38, %v809
        %v811 = vsel %vm808, %v810, %v806
        %v812 = vmul.f32 1.0, %v811
        %v813 = vrcp.pop %v735
        %v814 = vmul.f32 %v735, %v813
        %v815 = vsub.f32 1.0, %v814
        %v816 = vmul.f32 %v813, %v815
        %v817 = vadd.f32 %v813, %v816
        %vm818 = vweird.f32 %v735
        %vm819 = vweird.f32 %v813
        %vm820 = vmor %vm818, %vm819
        %v821 = vsel %vm820, %v813, %v817
        %v822 = vand.u32 2147483647, %v735
        %vm823 = vcmp.eq.f32.partialorder %v822, 8.507059e+37
        %v824 = vand.u32 %v735, 2147483648
        %v825 = vor.u32 1.1754944e-38, %v824
        %v826 = vsel %vm823, %v825, %v821
        %v827 = vmul.f32 1.0, %v826
        %v828 = vrcp.pop %v736
        %v829 = vmul.f32 %v736, %v828
        %v830 = vsub.f32 1.0, %v829
        %v831 = vmul.f32 %v828, %v830
        %v832 = vadd.f32 %v828, %v831
        %vm833 = vweird.f32 %v736
        %vm834 = vweird.f32 %v828
        %vm835 = vmor %vm833, %vm834
        %v836 = vsel %vm835, %v828, %v832
        %v837 = vand.u32 2147483647, %v736
        %vm838 = vcmp.eq.f32.partialorder %v837, 8.507059e+37
        %v839 = vand.u32 %v736, 2147483648
        %v840 = vor.u32 1.1754944e-38, %v839
        %v841 = vsel %vm838, %v840, %v836
        %v842 = vmul.f32 1.0, %v841
        %v843 = vrcp.pop %v737
        %v844 = vmul.f32 %v737, %v843
        %v845 = vsub.f32 1.0, %v844
        %v846 = vmul.f32 %v843, %v845
        %v847 = vadd.f32 %v843, %v846
        %vm848 = vweird.f32 %v737
        %vm849 = vweird.f32 %v843
        %vm850 = vmor %vm848, %vm849
        %v851 = vsel %vm850, %v843, %v847
        %v852 = vand.u32 2147483647, %v737
        %vm853 = vcmp.eq.f32.partialorder %v852, 8.507059e+37
        %v854 = vand.u32 %v737, 2147483648
        %v855 = vor.u32 1.1754944e-38, %v854
        %v856 = vsel %vm853, %v855, %v851
        %v857 = vmul.f32 1.0, %v856
        %v858 = vmul.f32 %v679, %v752
        %v859 = vmul.f32 %v680, %v767
        %v860 = vmul.f32 %v681, %v782
        %v861 = vmul.f32 %v682, %v797
        %v862 = vmul.f32 %v683, %v812
        %v863 = vmul.f32 %v684, %v827
        %v864 = vmul.f32 %v685, %v842
        %v865 = vmul.f32 %v686, %v857
        %v866 = vstv %s666
        %v867 = vmul.f32 %v866, %v858
        %v868 = vmul.f32 %v866, %v859
        %v869 = vmul.f32 %v866, %v860
        %v870 = vmul.f32 %v866, %v861
        %v871 = vmul.f32 %v866, %v862
        %v872 = vmul.f32 %v866, %v863
        %v873 = vmul.f32 %v866, %v864
        %v874 = vmul.f32 %v866, %v865
        %v875 = vtanh.pop %v654
        %v876 = vtanh.pop %v655
        %v877 = vtanh.pop %v656
        %v878 = vtanh.pop %v657
        %v879 = vtanh.pop %v658
        %v880 = vtanh.pop %v659
        %v881 = vtanh.pop %v660
        %v882 = vtanh.pop %v661
        %v883 = vstv %s667
        %v884 = vmul.f32 %v883, %v875
        %v885 = vmul.f32 %v883, %v876
        %v886 = vmul.f32 %v883, %v877
        %v887 = vmul.f32 %v883, %v878
        %v888 = vmul.f32 %v883, %v879
        %v889 = vmul.f32 %v883, %v880
        %v890 = vmul.f32 %v883, %v881
        %v891 = vmul.f32 %v883, %v882
        %v892 = vadd.f32 %v884, 1.0
        %v893 = vadd.f32 %v885, 1.0
        %v894 = vadd.f32 %v886, 1.0
        %v895 = vadd.f32 %v887, 1.0
        %v896 = vadd.f32 %v888, 1.0
        %v897 = vadd.f32 %v889, 1.0
        %v898 = vadd.f32 %v890, 1.0
        %v899 = vadd.f32 %v891, 1.0
        %v900 = vmul.f32 %v654, %v892
        %v901 = vmul.f32 %v655, %v893
        %v902 = vmul.f32 %v656, %v894
        %v903 = vmul.f32 %v657, %v895
        %v904 = vmul.f32 %v658, %v896
        %v905 = vmul.f32 %v659, %v897
        %v906 = vmul.f32 %v660, %v898
        %v907 = vmul.f32 %v661, %v899
        %v908 = vadd.f32 %v900, %v867
        %v909 = vadd.f32 %v901, %v868
        %v910 = vadd.f32 %v902, %v869
        %v911 = vadd.f32 %v903, %v870
        %v912 = vadd.f32 %v904, %v871
        %v913 = vadd.f32 %v905, %v872
        %v914 = vadd.f32 %v906, %v873
        %v915 = vadd.f32 %v907, %v874
        %v916 = vld [vmem:[%s6] sm:$0xf]
        %v917 = vld [vmem:[%s6 + $0x4] sm:$0xf]
        %v918 = vld [vmem:[%s6 + $0x8] sm:$0xf]
        %v919 = vld [vmem:[%s6 + $0xc] sm:$0xf]
        %v920 = vpack.c.bf16 %v909, %v908
        %v921 = vpack.c.bf16 %v911, %v910
        %v922 = vpack.c.bf16 %v913, %v912
        %v923 = vpack.c.bf16 %v915, %v914
        %v924 = vld [vmem:[%s7] sm:$0xff]
        %v925 = vld [vmem:[%s7 + $0x8] sm:$0xff]
        %v926 = vld [vmem:[%s7 + $0x10] sm:$0xff]
        %v927 = vld [vmem:[%s7 + $0x18] sm:$0xff]
        %929 = vset.pattern.permute.xlu0 0
        %930 = vperm.xlu0 %929, %v924
        %v931 = vpop.permute.xlu0 %930
        %934 = vset.pattern.permute.xlu0 0
        %935 = vperm.xlu0 %934, %v925
        %v936 = vpop.permute.xlu0 %935
        %939 = vset.pattern.permute.xlu0 0
        %940 = vperm.xlu0 %939, %v926
        %v941 = vpop.permute.xlu0 %940
        %944 = vset.pattern.permute.xlu0 0
        %945 = vperm.xlu0 %944, %v927
        %v946 = vpop.permute.xlu0 %945
        %v952 = vunpack.c.l.b16 %v916
        %v953 = vunpack.c.l.b16 %v917
        %v954 = vunpack.c.l.b16 %v918
        %v955 = vunpack.c.l.b16 %v919
        %v956 = vpack.c.b16 %v953, %v952
        %v957 = vpack.c.b16 %v955, %v954
        %vm958 = vcmask 523264
        %v960 = vsel %vm958, %v956, 0
        %v963 = vsel %vm958, %v957, 0
        %965 = vmatpush.bf16.msra.mxu0 0
        %966 = vmatpush.bf16.msra.mxu0 0
        %967 = vmatpush.bf16.msra.mxu0 0
        %968 = vmatpush.bf16.msra.mxu0 0
        %969 = vmatpush.bf16.msra.mxu0 %v923
        %970 = vmatpush.bf16.msra.mxu0 %v922
        %971 = vmatpush.bf16.msra.mxu0 %v921
        %972 = vmatpush.bf16.msra.mxu0 %v920
        %973 = vmatmul.bf16.gmra.mxu0 %v960
        %v974 = vpop.f32.mrf.mxu0
        %v975 = vadd.f32 %v931, %v974
        %v976 = vpop.f32.mrf.mxu0
        %v977 = vadd.f32 %v936, %v976
        %978 = vmatmul.bf16.gmra.mxu0 %v963
        %v979 = vpop.f32.mrf.mxu0
        %v980 = vadd.f32 %v941, %v979
        %v981 = vpop.f32.mrf.mxu0
        %v982 = vadd.f32 %v946, %v981
        %983 = vdwg.mxu0
        %v984 = vadd.f32 %v975, %v361
        %v985 = vadd.f32 %v977, %v362
        %v986 = vadd.f32 %v980, %v363
        %v987 = vadd.f32 %v982, %v364
        %988 = vst.msk [vmem:[%s359] sm:$0xff] %vm365, %v984
        %989 = vst.msk [vmem:[%s359 + $0x8] sm:$0xff] %vm365, %v985
        %990 = vst.msk [vmem:[%s359 + $0x10] sm:$0xff] %vm365, %v986
        %991 = vst.msk [vmem:[%s359 + $0x18] sm:$0xff] %vm365, %v987
        %p992 = scmp.lt.s32.totalorder %s22, 1
        %s993 = scalar_select %p992, %s22, 1
        %s994 = smul.addr %s993, 4
        %s995 = smul.addr %s994, 8
        %s996 = scalar_lea.vmem %s9, %s995
        // Predicated region
        $region65: #{vit_block.5} parent=55 // pred_check
          %p997 = pneg %p234
        $region66: #{vit_block.5} parent=55 // pred_check_branch
          %999 = sbr.rel (%p997) target = $region68
        $region67: #{vit_block.5} parent=55 // pred_region
          _
        $region68: #{vit_block.5} parent=55 // pred_fallthru
          _
      $region56: #{vit_block.5} parent=5 // pred_fallthru
        _
      %p1000 = scmp.le.s32.totalorder 2, %s17
      // Predicated region
      $region69: #{vit_block.5} parent=5 // pred_check
        %p1001 = pneg %p1000
      $region70: #{vit_block.5} parent=5 // pred_check_branch
        %1003 = sbr.rel (%p1001) target = $region72
      $region71: #{vit_block.5} parent=5 // pred_region
        %s1004 = ssub.s32 %s17, 2
        // Predicated region
        $region73: #{vit_block.5} parent=71 // pred_check
          %p1005 = pneg %p240
        $region74: #{vit_block.5} parent=71 // pred_check_branch
          %1007 = sbr.rel (%p1005) target = $region76
        $region75: #{vit_block.5} parent=71 // pred_region
          %p1008 = scmp.lt.s32.totalorder %s23, 1
          %s1009 = scalar_select %p1008, %s23, 1
          %s1010 = smul.addr %s1009, 4
          %s1011 = smul.addr %s1010, 8
          %s1012 = scalar_lea.vmem %s9, %s1011
        $region76: #{vit_block.5} parent=71 // pred_fallthru
          _
      $region72: #{vit_block.5} parent=5 // pred_fallthru
        _
    $region6: #{vit_block.5} parent=1 // loop_footer
      %s21 = sadd.s32 1, %s17
    $region7: #{vit_block.5} parent=1 // loop_footer_branch
      %16 = sbr.rel target = $region3
    $region8: #{vit_block.5} parent=1 // loop_exit
      _
    %1013 = vsyncpa [#allocation3], 1
    %s1014 = scalar_lea.sflag [#allocation3], 1
    %1015 = vsyncpa %s1014, 1
    %1016 = vsyncpa [#allocation5], 1

</llo_original>
